<compile_context>
chip_gen: v5e
topology: v5e:2x2
jax: 0.10.0
libtpu: 0.0.40
codegen_flags: <defaults>
</compile_context>

<pallas_src>
import jax
import jax.numpy as jnp
from jax.experimental import pallas as pl
from jax.experimental.pallas import tpu as pltpu


def _cdiv(a, b):
    return -(-a // b)


def _round_up(x, m):
    return ((x + m - 1) // m) * m


def _fast_sigmoid(x):
    # Exact identity; tanh is one EUP op (vs. sigmoid's exp + reciprocal).
    return 0.5 * (jnp.tanh(0.5 * x) + 1.0)


def _block_spec(shape, index_map, *, buffers=None):
    """BlockSpec, optionally with an explicit pipeline buffer count.

    buffers=1 single-buffers grid-invariant operands (constant index_map) so
    they do not pay the default double-buffer VMEM cost.  Falls back to a
    plain BlockSpec if this jax version has no pipeline_mode kwarg.
    """
    if buffers is not None and hasattr(pl, "Buffered"):
        try:
            return pl.BlockSpec(shape, index_map,
                                pipeline_mode=pl.Buffered(buffers))
        except TypeError:
            pass
    return pl.BlockSpec(shape, index_map)


def _default_batch_steps():
    # One batch tile per TensorCore: v7x has 2 TCs/chip, v5e/v6e have 1.
    try:
        kind = jax.devices()[0].device_kind.lower()
    except Exception:
        return 1
    return 2 if "v7" in kind else 1


def chatbot_kernel(x_ref, wih_ref, b_ref, wfc_ref, bfc_ref, out_ref, acc_ref):
    """One (batch-tile, vocab-tile) grid step.

    x_ref   : (bb, tk)      input tile (bf16 or f32)
    wih_ref : (tk, 3*Hp)    W_ih^T, i/g/o gate columns only, lane-padded
    b_ref   : (1, 3*Hp)     b_ih + b_hh (i/g/o slices), f32
    wfc_ref : (Hp, Op)      W_fc^T, lane-padded
    bfc_ref : (1, Op)       b_fc, f32
    out_ref : (bb, Op)      f32 output tile
    acc_ref : (bb, 3*Hp)    f32 gate accumulator (VMEM scratch)
    """
    k = pl.program_id(1)

    @pl.when(k == 0)
    def _():
        acc_ref[...] = jnp.zeros_like(acc_ref)

    acc_ref[...] += jnp.dot(x_ref[...], wih_ref[...],
                            preferred_element_type=jnp.float32)

    @pl.when(k == pl.num_programs(1) - 1)
    def _():
        Hp = wfc_ref.shape[0]
        gates = acc_ref[...] + b_ref[...]
        # Packed gate order: i, g, o (PyTorch's f-gate is dead with c0 == 0).
        # Every slice is 128-lane aligned (Hp is a multiple of 128).
        i_g = _fast_sigmoid(gates[:, 0 * Hp:1 * Hp])
        g_g = jnp.tanh(gates[:, 1 * Hp:2 * Hp])
        o_g = _fast_sigmoid(gates[:, 2 * Hp:3 * Hp])
        h1 = o_g * jnp.tanh(i_g * g_g)           # padded lanes are exactly 0
        out_ref[...] = (jnp.dot(h1.astype(wfc_ref.dtype), wfc_ref[...],
                                preferred_element_type=jnp.float32)
                        + bfc_ref[...])


def pack_params(params, *, lane=128, matmul_dtype=jnp.bfloat16):
    """Repack PyTorch-layout LSTM/Linear params for the kernel.

    params (PyTorch layout):
      w_ih : (4H, D)   w_hh : (4H, H)   b_ih, b_hh : (4H,)
      w_fc : (O, H)    b_fc : (O,)

    W_hh is dropped (h0 == 0) and only the i/g/o gate rows of W_ih / biases
    are kept (the forget gate is dead with c0 == 0).  Weights are transposed
    to (in, out) and every feature dim is zero-padded to a multiple of `lane`.
    """
    w_ih, w_hh, b_ih, b_hh, w_fc, b_fc = params
    del w_hh                                    # dead work: h0 is exactly zero
    H4, D = w_ih.shape
    H = H4 // 4
    O = w_fc.shape[0]

    Dp = _round_up(D, lane)
    Hp = _round_up(H, lane)
    Op = _round_up(O, lane)

    gates = jnp.array([0, 2, 3])                # i, g, o of PyTorch's (i,f,g,o)

    # (4H, D) -> (3, H, D) -> pad -> (Dp, 3, Hp) -> (Dp, 3*Hp); gate g lives in
    # the lane-aligned columns [g*Hp, (g+1)*Hp).
    wih_g = jnp.pad(w_ih.reshape(4, H, D)[gates],
                    ((0, 0), (0, Hp - H), (0, Dp - D)))
    wih_p = jnp.transpose(wih_g, (2, 0, 1)).reshape(Dp, 3 * Hp)

    b_p = jnp.pad((b_ih + b_hh).reshape(4, H)[gates],
                  ((0, 0), (0, Hp - H))).reshape(1, 3 * Hp).astype(jnp.float32)

    wfc_p = jnp.pad(w_fc.T, ((0, Hp - H), (0, Op - O)))        # (Hp, Op)
    bfc_p = jnp.pad(b_fc, (0, Op - O)).reshape(1, Op).astype(jnp.float32)

    return ((wih_p.astype(matmul_dtype), b_p,
             wfc_p.astype(matmul_dtype), bfc_p),
            (D, Dp, H, Hp, O, Op))


def _plan_tiles(B, Dp, Hp, Op, op_bytes, budget_bytes, batch_steps):
    """Pick the batch tile (bb) and vocab/K tile (tk) under a VMEM budget."""
    bb = _round_up(_cdiv(B, batch_steps), 8)
    tk = Dp

    def need(bb_, tk_):
        wih_buf = 1 if tk_ == Dp else 2          # single-buffered if invariant
        return (2 * bb_ * tk_ * op_bytes               # x tile (double-buffered)
                + wih_buf * tk_ * 3 * Hp * op_bytes    # W_ih^T tile
                + 2 * Hp * Op * op_bytes               # W_fc^T (conservative)
                + 2 * bb_ * Op * 4                     # f32 output tile
                + bb_ * 3 * Hp * 4                     # f32 gate accumulator
                + 2 * (3 * Hp + Op) * 4)               # biases

    # Shrink the vocab (K) tile first: keeps the batch tile (and grid-step
    # count) intact and turns the kernel into a pipelined K-reduction.
    while need(bb, tk) > budget_bytes and tk > 512:
        tk = max(512, _round_up(tk // 2, 128))
    # Last resort: shrink the batch tile (multiples of 8).
    while need(bb, tk) > budget_bytes and bb > 8:
        bb = max(8, (bb // 2) // 8 * 8)
    return bb, tk


def chatbot_forward(x, params, *, matmul_dtype=jnp.bfloat16,
                    vmem_budget_bytes=48 * 1024 * 1024, batch_steps=None):
    """x: (B, input_size) float32 -> (B, output_size) float32."""
    packed, dims = pack_params(params, matmul_dtype=matmul_dtype)
    wih_p, b_p, wfc_p, bfc_p = packed
    D, Dp, H, Hp, O, Op = dims
    B = x.shape[0]

    if batch_steps is None:
        batch_steps = _default_batch_steps()
    batch_steps = max(1, min(batch_steps, _cdiv(B, 8)))

    op_bytes = jnp.dtype(matmul_dtype).itemsize
    bb, tk = _plan_tiles(B, Dp, Hp, Op, op_bytes, vmem_budget_bytes,
                         batch_steps)

    # Re-pad the vocab axis to a multiple of the chosen K tile.
    Dk = _round_up(Dp, tk)
    if Dk > Dp:
        wih_p = jnp.pad(wih_p, ((0, Dk - Dp), (0, 0)))
    n_k = Dk // tk

    grid_b = _cdiv(B, bb)
    Bp = grid_b * bb
    x_p = jnp.pad(x, ((0, Bp - B), (0, Dk - D))).astype(matmul_dtype)

    in_specs = [
        pl.BlockSpec((bb, tk), lambda i, k: (i, k)),                  # x tile
        _block_spec((tk, 3 * Hp), lambda i, k: (k, 0),                # W_ih^T
                    buffers=1 if n_k == 1 else None),
        _block_spec((1, 3 * Hp), lambda i, k: (0, 0), buffers=1),     # LSTM bias
        _block_spec((Hp, Op), lambda i, k: (0, 0), buffers=1),        # W_fc^T
        _block_spec((1, Op), lambda i, k: (0, 0), buffers=1),         # b_fc
    ]

    out = pl.pallas_call(
        chatbot_kernel,
        out_shape=jax.ShapeDtypeStruct((Bp, Op), jnp.float32),
        grid_spec=pltpu.PrefetchScalarGridSpec(
            num_scalar_prefetch=0,
            grid=(grid_b, n_k),
            in_specs=in_specs,
            out_specs=pl.BlockSpec((bb, Op), lambda i, k: (i, 0)),
            scratch_shapes=[pltpu.VMEM((bb, 3 * Hp), jnp.float32)],
        ),
        compiler_params=pltpu.CompilerParams(
            dimension_semantics=("parallel", "arbitrary"),
            vmem_limit_bytes=int(vmem_budget_bytes)),
    )(x_p, wih_p, b_p, wfc_p, bfc_p)

    return out[:B, :O]


def init_params(key, input_size, hidden_size, output_size):
    """Deterministic synthetic parameters in PyTorch nn.LSTM / nn.Linear layout."""
    k = jax.random.split(key, 6)
    s = 1.0 / jnp.sqrt(hidden_size)

    def u(kk, shape):
        return jax.random.uniform(kk, shape, minval=-s, maxval=s,
                                  dtype=jnp.float32)

    w_ih = u(k[0], (4 * hidden_size, input_size))
    w_hh = u(k[1], (4 * hidden_size, hidden_size))
    b_ih = u(k[2], (4 * hidden_size,))
    b_hh = u(k[3], (4 * hidden_size,))
    w_fc = u(k[4], (output_size, hidden_size))
    b_fc = u(k[5], (output_size,))
    return w_ih, w_hh, b_ih, b_hh, w_fc, b_fc


def reference_forward(x, params):
    """Pure-JAX replica of ChatbotModel.forward (full f32, for correctness)."""
    w_ih, w_hh, b_ih, b_hh, w_fc, b_fc = params
    H = w_hh.shape[1]
    hi = jax.lax.Precision.HIGHEST
    h0 = jnp.zeros((x.shape[0], H), jnp.float32)
    c0 = jnp.zeros((x.shape[0], H), jnp.float32)
    gates = (jnp.dot(x, w_ih.T, precision=hi) + b_ih
             + jnp.dot(h0, w_hh.T, precision=hi) + b_hh)
    i_g = jax.nn.sigmoid(gates[:, 0 * H:1 * H])
    f_g = jax.nn.sigmoid(gates[:, 1 * H:2 * H])
    g_g = jnp.tanh(gates[:, 2 * H:3 * H])
    o_g = jax.nn.sigmoid(gates[:, 3 * H:4 * H])
    c1 = f_g * c0 + i_g * g_g
    h1 = o_g * jnp.tanh(c1)
    return jnp.dot(h1, w_fc.T, precision=hi) + b_fc


if __name__ == "__main__":
    # Small synthetic shapes consistent with the module: x is a bag-of-words
    # batch (B, vocab); the training script uses hidden_size = 64.
    batch = 300          # deliberately ragged (not a multiple of 8 or 256)
    input_size = 48      # toy vocab size
    hidden_size = 64
    output_size = 10     # toy number of intent classes

    key = jax.random.PRNGKey(0)
    kx, kp = jax.random.split(key)
    x = jax.random.normal(kx, (batch, input_size), dtype=jnp.float32)
    params = init_params(kp, input_size, hidden_size, output_size)

    ref = reference_forward(x, params)

    # Exact-parity path: f32 MXU operands.
    out_f32 = jax.block_until_ready(
        chatbot_forward(x, params, matmul_dtype=jnp.float32))
    assert out_f32.shape == (batch, output_size)
    assert jnp.allclose(out_f32, ref, atol=1e-4, rtol=1e-4), (
        float(jnp.max(jnp.abs(out_f32 - ref))))

    # Default fast path: bf16 MXU operands, f32 accumulation and gate math.
    out_bf16 = jax.block_until_ready(chatbot_forward(x, params))
    assert out_bf16.shape == (batch, output_size)
    assert jnp.allclose(out_bf16, ref, atol=3e-2, rtol=3e-2), (
        float(jnp.max(jnp.abs(out_bf16 - ref))))

    print("KERNEL_OK")
</pallas_src>

<mosaic_0001>
module attributes {stable_mosaic.version = 11 : i64} {
  func.func @chatbot_kernel(%arg0: i32, %arg1: i32, %arg2: memref<304x128xf32, #tpu.memory_space<vmem>>, %arg3: memref<128x384xf32, #tpu.memory_space<vmem>>, %arg4: memref<1x384xf32, #tpu.memory_space<vmem>>, %arg5: memref<128x128xf32, #tpu.memory_space<vmem>>, %arg6: memref<1x128xf32, #tpu.memory_space<vmem>>, %arg7: memref<304x128xf32, #tpu.memory_space<vmem>>, %arg8: memref<304x384xf32, #tpu.memory_space<vmem>>) attributes {dimension_semantics = [#tpu.dimension_semantics<parallel>, #tpu.dimension_semantics<arbitrary>], iteration_bounds = array<i64: 1, 1>, scalar_prefetch = 0 : i64, scratch_operands = 1 : i64, tpu.core_type = #tpu.core_type<tc>, window_params = [{transform_indices = @transform_0, window_bounds = array<i64: 304, 128>}, {pipeline_mode = #tpu.pipeline_mode<synchronous>, transform_indices = @transform_1, window_bounds = array<i64: 128, 384>}, {pipeline_mode = #tpu.pipeline_mode<synchronous>, transform_indices = @transform_2, window_bounds = array<i64: 1, 384>}, {pipeline_mode = #tpu.pipeline_mode<synchronous>, transform_indices = @transform_3, window_bounds = array<i64: 128, 128>}, {pipeline_mode = #tpu.pipeline_mode<synchronous>, transform_indices = @transform_4, window_bounds = array<i64: 1, 128>}, {transform_indices = @transform_5, window_bounds = array<i64: 304, 128>}]} {
    %c0_i32 = arith.constant 0 : i32
    %0 = arith.cmpi eq, %arg1, %c0_i32 : i32
    %1 = arith.extui %0 : i1 to i32
    %c0_i32_0 = arith.constant 0 : i32
    %2 = arith.cmpi ne, %1, %c0_i32_0 : i32
    scf.if %2 {
      %cst_10 = arith.constant 0.000000e+00 : f32
      %12 = vector.broadcast %cst_10 : f32 to vector<304x384xf32>
      %c0_11 = arith.constant 0 : index
      %c0_12 = arith.constant 0 : index
      %13 = vector.load %arg8[%c0_11, %c0_12] : memref<304x384xf32, #tpu.memory_space<vmem>>, vector<304x384xf32>
      tpu.vector_store %arg8[%c0_11, %c0_12], %12 {strides = array<i32>} : memref<304x384xf32, #tpu.memory_space<vmem>>, vector<304x384xf32>,
    } else {
    }
    %c0 = arith.constant 0 : index
    %c0_1 = arith.constant 0 : index
    %3 = vector.load %arg8[%c0, %c0_1] : memref<304x384xf32, #tpu.memory_space<vmem>>, vector<304x384xf32>
    %c0_2 = arith.constant 0 : index
    %c0_3 = arith.constant 0 : index
    %4 = vector.load %arg2[%c0_2, %c0_3] : memref<304x128xf32, #tpu.memory_space<vmem>>, vector<304x128xf32>
    %c0_4 = arith.constant 0 : index
    %c0_5 = arith.constant 0 : index
    %5 = vector.load %arg3[%c0_4, %c0_5] : memref<128x384xf32, #tpu.memory_space<vmem>>, vector<128x384xf32>
    %cst = arith.constant dense<0.000000e+00> : vector<304x384xf32>
    %6 = tpu.matmul %4, %5, %cst {dimension_numbers = #tpu.dot_dimension_numbers<[1], [0], [0], [1], [0, 0, 1, 1], [], []>} : vector<304x128xf32>, vector<128x384xf32>, vector<304x384xf32> -> vector<304x384xf32>
    %7 = arith.addf %3, %6 : vector<304x384xf32>
    %c0_6 = arith.constant 0 : index
    %c0_7 = arith.constant 0 : index
    %8 = vector.load %arg8[%c0_6, %c0_7] : memref<304x384xf32, #tpu.memory_space<vmem>>, vector<304x384xf32>
    tpu.vector_store %arg8[%c0_6, %c0_7], %7 {strides = array<i32>} : memref<304x384xf32, #tpu.memory_space<vmem>>, vector<304x384xf32>,
    %c0_i32_8 = arith.constant 0 : i32
    %9 = arith.cmpi eq, %arg1, %c0_i32_8 : i32
    %10 = arith.extui %9 : i1 to i32
    %c0_i32_9 = arith.constant 0 : i32
    %11 = arith.cmpi ne, %10, %c0_i32_9 : i32
    scf.if %11 {
      %c0_10 = arith.constant 0 : index
      %c0_11 = arith.constant 0 : index
      %12 = vector.load %arg8[%c0_10, %c0_11] : memref<304x384xf32, #tpu.memory_space<vmem>>, vector<304x384xf32>
      %c0_12 = arith.constant 0 : index
      %c0_13 = arith.constant 0 : index
      %13 = vector.load %arg4[%c0_12, %c0_13] : memref<1x384xf32, #tpu.memory_space<vmem>>, vector<1x384xf32>
      %14 = vector.broadcast %13 : vector<1x384xf32> to vector<304x384xf32>
      %15 = arith.addf %12, %14 : vector<304x384xf32>
      %16 = vector.extract_strided_slice %15 {offsets = [0, 0], sizes = [304, 128], strides = [1, 1]} : vector<304x384xf32> to vector<304x128xf32>
      %cst_14 = arith.constant 5.000000e-01 : f32
      %17 = vector.broadcast %cst_14 : f32 to vector<304x128xf32>
      %18 = arith.mulf %17, %16 : vector<304x128xf32>
      %19 = math.tanh %18 : vector<304x128xf32>
      %cst_15 = arith.constant 1.000000e+00 : f32
      %20 = vector.broadcast %cst_15 : f32 to vector<304x128xf32>
      %21 = arith.addf %19, %20 : vector<304x128xf32>
      %cst_16 = arith.constant 5.000000e-01 : f32
      %22 = vector.broadcast %cst_16 : f32 to vector<304x128xf32>
      %23 = arith.mulf %22, %21 : vector<304x128xf32>
      %24 = vector.extract_strided_slice %15 {offsets = [0, 128], sizes = [304, 128], strides = [1, 1]} : vector<304x384xf32> to vector<304x128xf32>
      %25 = math.tanh %24 : vector<304x128xf32>
      %26 = vector.extract_strided_slice %15 {offsets = [0, 256], sizes = [304, 128], strides = [1, 1]} : vector<304x384xf32> to vector<304x128xf32>
      %cst_17 = arith.constant 5.000000e-01 : f32
      %27 = vector.broadcast %cst_17 : f32 to vector<304x128xf32>
      %28 = arith.mulf %27, %26 : vector<304x128xf32>
      %29 = math.tanh %28 : vector<304x128xf32>
      %cst_18 = arith.constant 1.000000e+00 : f32
      %30 = vector.broadcast %cst_18 : f32 to vector<304x128xf32>
      %31 = arith.addf %29, %30 : vector<304x128xf32>
      %cst_19 = arith.constant 5.000000e-01 : f32
      %32 = vector.broadcast %cst_19 : f32 to vector<304x128xf32>
      %33 = arith.mulf %32, %31 : vector<304x128xf32>
      %34 = arith.mulf %23, %25 : vector<304x128xf32>
      %35 = math.tanh %34 : vector<304x128xf32>
      %36 = arith.mulf %33, %35 : vector<304x128xf32>
      %c0_20 = arith.constant 0 : index
      %c0_21 = arith.constant 0 : index
      %37 = vector.load %arg5[%c0_20, %c0_21] : memref<128x128xf32, #tpu.memory_space<vmem>>, vector<128x128xf32>
      %cst_22 = arith.constant dense<0.000000e+00> : vector<304x128xf32>
      %38 = tpu.matmul %36, %37, %cst_22 {dimension_numbers = #tpu.dot_dimension_numbers<[1], [0], [0], [1], [0, 0, 1, 1], [], []>} : vector<304x128xf32>, vector<128x128xf32>, vector<304x128xf32> -> vector<304x128xf32>
      %c0_23 = arith.constant 0 : index
      %c0_24 = arith.constant 0 : index
      %39 = vector.load %arg6[%c0_23, %c0_24] : memref<1x128xf32, #tpu.memory_space<vmem>>, vector<1x128xf32>
      %40 = vector.broadcast %39 : vector<1x128xf32> to vector<304x128xf32>
      %41 = arith.addf %38, %40 : vector<304x128xf32>
      %c0_25 = arith.constant 0 : index
      %c0_26 = arith.constant 0 : index
      %42 = vector.load %arg7[%c0_25, %c0_26] : memref<304x128xf32, #tpu.memory_space<vmem>>, vector<304x128xf32>
      tpu.vector_store %arg7[%c0_25, %c0_26], %41 {strides = array<i32>} : memref<304x128xf32, #tpu.memory_space<vmem>>, vector<304x128xf32>,
    } else {
    }
    return
  }
  func.func @transform_0(%arg0: i32, %arg1: i32) -> (i32, i32) {
    %c0_i32 = arith.constant 0 : i32
    return %arg0, %arg1 : i32, i32
  }
  func.func @transform_1(%arg0: i32, %arg1: i32) -> (i32, i32) {
    %c0_i32 = arith.constant 0 : i32
    %c0_i32_0 = arith.constant 0 : i32
    return %arg1, %c0_i32 : i32, i32
  }
  func.func @transform_2(%arg0: i32, %arg1: i32) -> (i32, i32) {
    %c0_i32 = arith.constant 0 : i32
    %c0_i32_0 = arith.constant 0 : i32
    %c0_i32_1 = arith.constant 0 : i32
    return %c0_i32, %c0_i32_0 : i32, i32
  }
  func.func @transform_3(%arg0: i32, %arg1: i32) -> (i32, i32) {
    %c0_i32 = arith.constant 0 : i32
    %c0_i32_0 = arith.constant 0 : i32
    %c0_i32_1 = arith.constant 0 : i32
    return %c0_i32, %c0_i32_0 : i32, i32
  }
  func.func @transform_4(%arg0: i32, %arg1: i32) -> (i32, i32) {
    %c0_i32 = arith.constant 0 : i32
    %c0_i32_0 = arith.constant 0 : i32
    %c0_i32_1 = arith.constant 0 : i32
    return %c0_i32, %c0_i32_0 : i32, i32
  }
  func.func @transform_5(%arg0: i32, %arg1: i32) -> (i32, i32) {
    %c0_i32 = arith.constant 0 : i32
    %c0_i32_0 = arith.constant 0 : i32
    return %arg0, %c0_i32 : i32, i32
  }
}

</mosaic_0001>

<llo_original>
// kernel: tpu_custom_call.1
$region0: #{tpu_custom_call.1}
  #allocation0 [shape = 'u32[]', space=smem, size = 0x4, offset = 0x4, fixed_abs, tag = 'smem constant byte address 0x4 - core index']
  #allocation1 [shape = 'u32[72,128]{1,0:T(1,128)}', space=vmem, size = 0x9000, scoped, tag = 'internal scratch']
  #allocation2 [shape = 'f32[304,384]{1,0:T(8,128)}', space=vmem, size = 0x72000, scoped, tag = 'scratch operand']
  %s0 = inlined_call_operand.hbm [shape: f32[304,128], index: 0, kind: input, shape index: {}]
  %s1 = inlined_call_operand.hbm [shape: f32[128,384], index: 1, kind: input, shape index: {}]
  %s2 = inlined_call_operand.hbm [shape: f32[1,384], index: 2, kind: input, shape index: {}]
  %s3 = inlined_call_operand.hbm [shape: f32[128,128], index: 3, kind: input, shape index: {}]
  %s4 = inlined_call_operand.vmem [shape: f32[1,128], index: 4, kind: input, shape index: {}]
  %s5 = inlined_call_operand.hbm [shape: f32[304,128], index: 5, kind: output, shape index: {}]
  %s6 = sld [smem:[#allocation0]]
  $region54: #{tpu_custom_call.1} parent=0
    _
  %s8 = ssub.s32 1, %s6
  %s9 = scalar_select 0, %s8, %s6
  $region1: #{tpu_custom_call.1} parent=0
    #allocation3 [shape = 'u8[155648]{0}', space=vmem, size = 0x26000, scoped, tag = 'input window, operand 0, single buffered']
    #allocation4 [shape = 's32[1]{0}', space=sflag, size = 0x4, scoped, tag = 'scoped memory for tpu_custom_call.1']
    #allocation5 [shape = 's32[1]{0}', space=sflag, size = 0x4, scoped, tag = 'scoped memory for tpu_custom_call.1']
    #allocation6 [shape = 'u8[196608]{0}', space=vmem, size = 0x30000, scoped, tag = 'input window, operand 1, single buffered']
    #allocation7 [shape = 's32[1]{0}', space=sflag, size = 0x4, scoped, tag = 'scoped memory for tpu_custom_call.1']
    #allocation8 [shape = 'u8[1536]{0}', space=vmem, size = 0x800, scoped, tag = 'input window, operand 2, single buffered']
    #allocation9 [shape = 'u8[65536]{0}', space=vmem, size = 0x10000, scoped, tag = 'input window, operand 3, single buffered']
    #allocation10 [shape = 's32[1]{0}', space=sflag, size = 0x4, scoped, tag = 'scoped memory for tpu_custom_call.1']
    #allocation11 [shape = 'u8[155648]{0}', space=vmem, size = 0x26000, scoped, tag = 'output window, operand 0, single buffered']
    %10 = vsyncpa [#allocation4], 0
    %11 = vsyncpa [#allocation7], 0
    %12 = vsyncpa [#allocation10], 0
    %13 = vsyncpa [#allocation5], 0
    // Predicated region
    $region2: #{tpu_custom_call.1} parent=1 // pred_check
      _
    $region3: #{tpu_custom_call.1} parent=1 // pred_check_branch
      %15 = sbr.rel (0) target = $region5
    $region4: #{tpu_custom_call.1} parent=1 // pred_region
      %17 = vsyncadd [#allocation4], 0
      %s18 = sshll.u32 %s0, 4
      %s19 = int_to_ptr.hbm [resolvable:$true] %s18
      %s20 = sshll.u32 [#allocation3], 4
      %s21 = int_to_ptr.vmem [resolvable:$true] %s20
      %26 = dma.hbm_to_vmem [thread:$0]  %s19, 4864, %s21, [#allocation4], 128, 128, 8
    $region5: #{tpu_custom_call.1} parent=1 // pred_fallthru
      _
    // Predicated region
    $region6: #{tpu_custom_call.1} parent=1 // pred_check
      _
    $region7: #{tpu_custom_call.1} parent=1 // pred_check_branch
      %28 = sbr.rel (0) target = $region9
    $region8: #{tpu_custom_call.1} parent=1 // pred_region
      %30 = vsyncadd [#allocation7], 0
      %s31 = sshll.u32 %s1, 4
      %s32 = int_to_ptr.hbm [resolvable:$true] %s31
      %s33 = sshll.u32 [#allocation6], 4
      %s34 = int_to_ptr.vmem [resolvable:$true] %s33
      %39 = dma.hbm_to_vmem [thread:$0]  %s32, 6144, %s34, [#allocation7], 384, 384, 24
    $region9: #{tpu_custom_call.1} parent=1 // pred_fallthru
      _
    // Predicated region
    $region10: #{tpu_custom_call.1} parent=1 // pred_check
      _
    $region11: #{tpu_custom_call.1} parent=1 // pred_check_branch
      %41 = sbr.rel (0) target = $region13
    $region12: #{tpu_custom_call.1} parent=1 // pred_region
      %43 = vsyncadd [#allocation7], 0
      %s45 = sshll.u32 %s2, 4
      %s46 = int_to_ptr.hbm [resolvable:$true] %s45
      %s47 = sshll.u32 [#allocation8], 4
      %s48 = int_to_ptr.vmem [resolvable:$true] %s47
      %50 = dma.hbm_to_vmem [thread:$0]  %s46, 48, %s48, [#allocation7]
    $region13: #{tpu_custom_call.1} parent=1 // pred_fallthru
      _
    // Predicated region
    $region14: #{tpu_custom_call.1} parent=1 // pred_check
      _
    $region15: #{tpu_custom_call.1} parent=1 // pred_check_branch
      %52 = sbr.rel (0) target = $region17
    $region16: #{tpu_custom_call.1} parent=1 // pred_region
      %54 = vsyncadd [#allocation10], 0
      %s55 = sshll.u32 %s3, 4
      %s56 = int_to_ptr.hbm [resolvable:$true] %s55
      %s57 = sshll.u32 [#allocation9], 4
      %s58 = int_to_ptr.vmem [resolvable:$true] %s57
      %63 = dma.hbm_to_vmem [thread:$0]  %s56, 2048, %s58, [#allocation10], 128, 128, 8
    $region17: #{tpu_custom_call.1} parent=1 // pred_fallthru
      _
    // Predicated region
    $region18: #{tpu_custom_call.1} parent=1 // pred_check
      _
    $region19: #{tpu_custom_call.1} parent=1 // pred_check_branch
      %65 = sbr.rel (0) target = $region21
    $region20: #{tpu_custom_call.1} parent=1 // pred_region
      _
    $region21: #{tpu_custom_call.1} parent=1 // pred_fallthru
      _
    // Predicated region
    $region22: #{tpu_custom_call.1} parent=1 // pred_check
      _
    $region23: #{tpu_custom_call.1} parent=1 // pred_check_branch
      %67 = sbr.rel (0) target = $region25
    $region24: #{tpu_custom_call.1} parent=1 // pred_region
      %69 = dma.done [#allocation4], 4864
    $region25: #{tpu_custom_call.1} parent=1 // pred_fallthru
      _
    // Predicated region
    $region26: #{tpu_custom_call.1} parent=1 // pred_check
      _
    $region27: #{tpu_custom_call.1} parent=1 // pred_check_branch
      %71 = sbr.rel (0) target = $region29
    $region28: #{tpu_custom_call.1} parent=1 // pred_region
      %73 = dma.done [#allocation7], 6144
    $region29: #{tpu_custom_call.1} parent=1 // pred_fallthru
      _
    // Predicated region
    $region30: #{tpu_custom_call.1} parent=1 // pred_check
      _
    $region31: #{tpu_custom_call.1} parent=1 // pred_check_branch
      %75 = sbr.rel (0) target = $region33
    $region32: #{tpu_custom_call.1} parent=1 // pred_region
      %77 = dma.done [#allocation7], 48
    $region33: #{tpu_custom_call.1} parent=1 // pred_fallthru
      _
    // Predicated region
    $region34: #{tpu_custom_call.1} parent=1 // pred_check
      _
    $region35: #{tpu_custom_call.1} parent=1 // pred_check_branch
      %79 = sbr.rel (0) target = $region37
    $region36: #{tpu_custom_call.1} parent=1 // pred_region
      %81 = dma.done [#allocation10], 2048
    $region37: #{tpu_custom_call.1} parent=1 // pred_fallthru
      _
    %p82 = scmp.eq.s32.totalorder 0, 0
    // Predicated region
    $region38: #{tpu_custom_call.1} parent=1 // pred_check
      %p83 = pneg %p82
    $region39: #{tpu_custom_call.1} parent=1 // pred_check_branch
      %85 = sbr.rel (%p83) target = $region41
    $region40: #{tpu_custom_call.1} parent=1 // pred_region
      %86 = vst [vmem:[#allocation2] sm:$0xff] 0.0
      %87 = vst [vmem:[#allocation2 + $0x8] sm:$0xff] 0.0
      %88 = vst [vmem:[#allocation2 + $0x10] sm:$0xff] 0.0
      %89 = vst [vmem:[#allocation2 + $0x18] sm:$0xff] 0.0
      %90 = vst [vmem:[#allocation2 + $0x20] sm:$0xff] 0.0
      %91 = vst [vmem:[#allocation2 + $0x28] sm:$0xff] 0.0
      %92 = vst [vmem:[#allocation2 + $0x30] sm:$0xff] 0.0
      %93 = vst [vmem:[#allocation2 + $0x38] sm:$0xff] 0.0
      %94 = vst [vmem:[#allocation2 + $0x40] sm:$0xff] 0.0
      %95 = vst [vmem:[#allocation2 + $0x48] sm:$0xff] 0.0
      %96 = vst [vmem:[#allocation2 + $0x50] sm:$0xff] 0.0
      %97 = vst [vmem:[#allocation2 + $0x58] sm:$0xff] 0.0
      %98 = vst [vmem:[#allocation2 + $0x60] sm:$0xff] 0.0
      %99 = vst [vmem:[#allocation2 + $0x68] sm:$0xff] 0.0
      %100 = vst [vmem:[#allocation2 + $0x70] sm:$0xff] 0.0
      %101 = vst [vmem:[#allocation2 + $0x78] sm:$0xff] 0.0
      %102 = vst [vmem:[#allocation2 + $0x80] sm:$0xff] 0.0
      %103 = vst [vmem:[#allocation2 + $0x88] sm:$0xff] 0.0
      %104 = vst [vmem:[#allocation2 + $0x90] sm:$0xff] 0.0
      %105 = vst [vmem:[#allocation2 + $0x98] sm:$0xff] 0.0
      %106 = vst [vmem:[#allocation2 + $0xa0] sm:$0xff] 0.0
      %107 = vst [vmem:[#allocation2 + $0xa8] sm:$0xff] 0.0
      %108 = vst [vmem:[#allocation2 + $0xb0] sm:$0xff] 0.0
      %109 = vst [vmem:[#allocation2 + $0xb8] sm:$0xff] 0.0
      %110 = vst [vmem:[#allocation2 + $0xc0] sm:$0xff] 0.0
      %111 = vst [vmem:[#allocation2 + $0xc8] sm:$0xff] 0.0
      %112 = vst [vmem:[#allocation2 + $0xd0] sm:$0xff] 0.0
      %113 = vst [vmem:[#allocation2 + $0xd8] sm:$0xff] 0.0
      %114 = vst [vmem:[#allocation2 + $0xe0] sm:$0xff] 0.0
      %115 = vst [vmem:[#allocation2 + $0xe8] sm:$0xff] 0.0
      %116 = vst [vmem:[#allocation2 + $0xf0] sm:$0xff] 0.0
      %117 = vst [vmem:[#allocation2 + $0xf8] sm:$0xff] 0.0
      %118 = vst [vmem:[#allocation2 + $0x100] sm:$0xff] 0.0
      %119 = vst [vmem:[#allocation2 + $0x108] sm:$0xff] 0.0
      %120 = vst [vmem:[#allocation2 + $0x110] sm:$0xff] 0.0
      %121 = vst [vmem:[#allocation2 + $0x118] sm:$0xff] 0.0
      %122 = vst [vmem:[#allocation2 + $0x120] sm:$0xff] 0.0
      %123 = vst [vmem:[#allocation2 + $0x128] sm:$0xff] 0.0
      %124 = vst [vmem:[#allocation2 + $0x130] sm:$0xff] 0.0
      %125 = vst [vmem:[#allocation2 + $0x138] sm:$0xff] 0.0
      %126 = vst [vmem:[#allocation2 + $0x140] sm:$0xff] 0.0
      %127 = vst [vmem:[#allocation2 + $0x148] sm:$0xff] 0.0
      %128 = vst [vmem:[#allocation2 + $0x150] sm:$0xff] 0.0
      %129 = vst [vmem:[#allocation2 + $0x158] sm:$0xff] 0.0
      %130 = vst [vmem:[#allocation2 + $0x160] sm:$0xff] 0.0
      %131 = vst [vmem:[#allocation2 + $0x168] sm:$0xff] 0.0
      %132 = vst [vmem:[#allocation2 + $0x170] sm:$0xff] 0.0
      %133 = vst [vmem:[#allocation2 + $0x178] sm:$0xff] 0.0
      %134 = vst [vmem:[#allocation2 + $0x180] sm:$0xff] 0.0
      %135 = vst [vmem:[#allocation2 + $0x188] sm:$0xff] 0.0
      %136 = vst [vmem:[#allocation2 + $0x190] sm:$0xff] 0.0
      %137 = vst [vmem:[#allocation2 + $0x198] sm:$0xff] 0.0
      %138 = vst [vmem:[#allocation2 + $0x1a0] sm:$0xff] 0.0
      %139 = vst [vmem:[#allocation2 + $0x1a8] sm:$0xff] 0.0
      %140 = vst [vmem:[#allocation2 + $0x1b0] sm:$0xff] 0.0
      %141 = vst [vmem:[#allocation2 + $0x1b8] sm:$0xff] 0.0
      %142 = vst [vmem:[#allocation2 + $0x1c0] sm:$0xff] 0.0
      %143 = vst [vmem:[#allocation2 + $0x1c8] sm:$0xff] 0.0
      %144 = vst [vmem:[#allocation2 + $0x1d0] sm:$0xff] 0.0
      %145 = vst [vmem:[#allocation2 + $0x1d8] sm:$0xff] 0.0
      %146 = vst [vmem:[#allocation2 + $0x1e0] sm:$0xff] 0.0
      %147 = vst [vmem:[#allocation2 + $0x1e8] sm:$0xff] 0.0
      %148 = vst [vmem:[#allocation2 + $0x1f0] sm:$0xff] 0.0
      %149 = vst [vmem:[#allocation2 + $0x1f8] sm:$0xff] 0.0
      %150 = vst [vmem:[#allocation2 + $0x200] sm:$0xff] 0.0
      %151 = vst [vmem:[#allocation2 + $0x208] sm:$0xff] 0.0
      %152 = vst [vmem:[#allocation2 + $0x210] sm:$0xff] 0.0
      %153 = vst [vmem:[#allocation2 + $0x218] sm:$0xff] 0.0
      %154 = vst [vmem:[#allocation2 + $0x220] sm:$0xff] 0.0
      %155 = vst [vmem:[#allocation2 + $0x228] sm:$0xff] 0.0
      %156 = vst [vmem:[#allocation2 + $0x230] sm:$0xff] 0.0
      %157 = vst [vmem:[#allocation2 + $0x238] sm:$0xff] 0.0
      %158 = vst [vmem:[#allocation2 + $0x240] sm:$0xff] 0.0
      %159 = vst [vmem:[#allocation2 + $0x248] sm:$0xff] 0.0
      %160 = vst [vmem:[#allocation2 + $0x250] sm:$0xff] 0.0
      %161 = vst [vmem:[#allocation2 + $0x258] sm:$0xff] 0.0
      %162 = vst [vmem:[#allocation2 + $0x260] sm:$0xff] 0.0
      %163 = vst [vmem:[#allocation2 + $0x268] sm:$0xff] 0.0
      %164 = vst [vmem:[#allocation2 + $0x270] sm:$0xff] 0.0
      %165 = vst [vmem:[#allocation2 + $0x278] sm:$0xff] 0.0
      %166 = vst [vmem:[#allocation2 + $0x280] sm:$0xff] 0.0
      %167 = vst [vmem:[#allocation2 + $0x288] sm:$0xff] 0.0
      %168 = vst [vmem:[#allocation2 + $0x290] sm:$0xff] 0.0
      %169 = vst [vmem:[#allocation2 + $0x298] sm:$0xff] 0.0
      %170 = vst [vmem:[#allocation2 + $0x2a0] sm:$0xff] 0.0
      %171 = vst [vmem:[#allocation2 + $0x2a8] sm:$0xff] 0.0
      %172 = vst [vmem:[#allocation2 + $0x2b0] sm:$0xff] 0.0
      %173 = vst [vmem:[#allocation2 + $0x2b8] sm:$0xff] 0.0
      %174 = vst [vmem:[#allocation2 + $0x2c0] sm:$0xff] 0.0
      %175 = vst [vmem:[#allocation2 + $0x2c8] sm:$0xff] 0.0
      %176 = vst [vmem:[#allocation2 + $0x2d0] sm:$0xff] 0.0
      %177 = vst [vmem:[#allocation2 + $0x2d8] sm:$0xff] 0.0
      %178 = vst [vmem:[#allocation2 + $0x2e0] sm:$0xff] 0.0
      %179 = vst [vmem:[#allocation2 + $0x2e8] sm:$0xff] 0.0
      %180 = vst [vmem:[#allocation2 + $0x2f0] sm:$0xff] 0.0
      %181 = vst [vmem:[#allocation2 + $0x2f8] sm:$0xff] 0.0
      %182 = vst [vmem:[#allocation2 + $0x300] sm:$0xff] 0.0
      %183 = vst [vmem:[#allocation2 + $0x308] sm:$0xff] 0.0
      %184 = vst [vmem:[#allocation2 + $0x310] sm:$0xff] 0.0
      %185 = vst [vmem:[#allocation2 + $0x318] sm:$0xff] 0.0
      %186 = vst [vmem:[#allocation2 + $0x320] sm:$0xff] 0.0
      %187 = vst [vmem:[#allocation2 + $0x328] sm:$0xff] 0.0
      %188 = vst [vmem:[#allocation2 + $0x330] sm:$0xff] 0.0
      %189 = vst [vmem:[#allocation2 + $0x338] sm:$0xff] 0.0
      %190 = vst [vmem:[#allocation2 + $0x340] sm:$0xff] 0.0
      %191 = vst [vmem:[#allocation2 + $0x348] sm:$0xff] 0.0
      %192 = vst [vmem:[#allocation2 + $0x350] sm:$0xff] 0.0
      %193 = vst [vmem:[#allocation2 + $0x358] sm:$0xff] 0.0
      %194 = vst [vmem:[#allocation2 + $0x360] sm:$0xff] 0.0
      %195 = vst [vmem:[#allocation2 + $0x368] sm:$0xff] 0.0
      %196 = vst [vmem:[#allocation2 + $0x370] sm:$0xff] 0.0
      %197 = vst [vmem:[#allocation2 + $0x378] sm:$0xff] 0.0
      %198 = vst [vmem:[#allocation2 + $0x380] sm:$0xff] 0.0
      %199 = vst [vmem:[#allocation2 + $0x388] sm:$0xff] 0.0
    $region41: #{tpu_custom_call.1} parent=1 // pred_fallthru
      _
    %v200 = vld [vmem:[#allocation2] sm:$0xff]
    %v201 = vld [vmem:[#allocation2 + $0x8] sm:$0xff]
    %v202 = vld [vmem:[#allocation2 + $0x10] sm:$0xff]
    %v203 = vld [vmem:[#allocation2 + $0x18] sm:$0xff]
    %v204 = vld [vmem:[#allocation2 + $0x20] sm:$0xff]
    %v205 = vld [vmem:[#allocation2 + $0x28] sm:$0xff]
    %v206 = vld [vmem:[#allocation2 + $0x30] sm:$0xff]
    %v207 = vld [vmem:[#allocation2 + $0x38] sm:$0xff]
    %v208 = vld [vmem:[#allocation2 + $0x40] sm:$0xff]
    %v209 = vld [vmem:[#allocation2 + $0x48] sm:$0xff]
    %v210 = vld [vmem:[#allocation2 + $0x50] sm:$0xff]
    %v211 = vld [vmem:[#allocation2 + $0x58] sm:$0xff]
    %v212 = vld [vmem:[#allocation2 + $0x60] sm:$0xff]
    %v213 = vld [vmem:[#allocation2 + $0x68] sm:$0xff]
    %v214 = vld [vmem:[#allocation2 + $0x70] sm:$0xff]
    %v215 = vld [vmem:[#allocation2 + $0x78] sm:$0xff]
    %v216 = vld [vmem:[#allocation2 + $0x80] sm:$0xff]
    %v217 = vld [vmem:[#allocation2 + $0x88] sm:$0xff]
    %v218 = vld [vmem:[#allocation2 + $0x90] sm:$0xff]
    %v219 = vld [vmem:[#allocation2 + $0x98] sm:$0xff]
    %v220 = vld [vmem:[#allocation2 + $0xa0] sm:$0xff]
    %v221 = vld [vmem:[#allocation2 + $0xa8] sm:$0xff]
    %v222 = vld [vmem:[#allocation2 + $0xb0] sm:$0xff]
    %v223 = vld [vmem:[#allocation2 + $0xb8] sm:$0xff]
    %v224 = vld [vmem:[#allocation2 + $0xc0] sm:$0xff]
    %v225 = vld [vmem:[#allocation2 + $0xc8] sm:$0xff]
    %v226 = vld [vmem:[#allocation2 + $0xd0] sm:$0xff]
    %v227 = vld [vmem:[#allocation2 + $0xd8] sm:$0xff]
    %v228 = vld [vmem:[#allocation2 + $0xe0] sm:$0xff]
    %v229 = vld [vmem:[#allocation2 + $0xe8] sm:$0xff]
    %v230 = vld [vmem:[#allocation2 + $0xf0] sm:$0xff]
    %v231 = vld [vmem:[#allocation2 + $0xf8] sm:$0xff]
    %v232 = vld [vmem:[#allocation2 + $0x100] sm:$0xff]
    %v233 = vld [vmem:[#allocation2 + $0x108] sm:$0xff]
    %v234 = vld [vmem:[#allocation2 + $0x110] sm:$0xff]
    %v235 = vld [vmem:[#allocation2 + $0x118] sm:$0xff]
    %v236 = vld [vmem:[#allocation2 + $0x120] sm:$0xff]
    %v237 = vld [vmem:[#allocation2 + $0x128] sm:$0xff]
    %v238 = vld [vmem:[#allocation2 + $0x130] sm:$0xff]
    %v239 = vld [vmem:[#allocation2 + $0x138] sm:$0xff]
    %v240 = vld [vmem:[#allocation2 + $0x140] sm:$0xff]
    %v241 = vld [vmem:[#allocation2 + $0x148] sm:$0xff]
    %v242 = vld [vmem:[#allocation2 + $0x150] sm:$0xff]
    %v243 = vld [vmem:[#allocation2 + $0x158] sm:$0xff]
    %v244 = vld [vmem:[#allocation2 + $0x160] sm:$0xff]
    %v245 = vld [vmem:[#allocation2 + $0x168] sm:$0xff]
    %v246 = vld [vmem:[#allocation2 + $0x170] sm:$0xff]
    %v247 = vld [vmem:[#allocation2 + $0x178] sm:$0xff]
    %v248 = vld [vmem:[#allocation2 + $0x180] sm:$0xff]
    %v249 = vld [vmem:[#allocation2 + $0x188] sm:$0xff]
    %v250 = vld [vmem:[#allocation2 + $0x190] sm:$0xff]
    %v251 = vld [vmem:[#allocation2 + $0x198] sm:$0xff]
    %v252 = vld [vmem:[#allocation2 + $0x1a0] sm:$0xff]
    %v253 = vld [vmem:[#allocation2 + $0x1a8] sm:$0xff]
    %v254 = vld [vmem:[#allocation2 + $0x1b0] sm:$0xff]
    %v255 = vld [vmem:[#allocation2 + $0x1b8] sm:$0xff]
    %v256 = vld [vmem:[#allocation2 + $0x1c0] sm:$0xff]
    %v257 = vld [vmem:[#allocation2 + $0x1c8] sm:$0xff]
    %v258 = vld [vmem:[#allocation2 + $0x1d0] sm:$0xff]
    %v259 = vld [vmem:[#allocation2 + $0x1d8] sm:$0xff]
    %v260 = vld [vmem:[#allocation2 + $0x1e0] sm:$0xff]
    %v261 = vld [vmem:[#allocation2 + $0x1e8] sm:$0xff]
    %v262 = vld [vmem:[#allocation2 + $0x1f0] sm:$0xff]
    %v263 = vld [vmem:[#allocation2 + $0x1f8] sm:$0xff]
    %v264 = vld [vmem:[#allocation2 + $0x200] sm:$0xff]
    %v265 = vld [vmem:[#allocation2 + $0x208] sm:$0xff]
    %v266 = vld [vmem:[#allocation2 + $0x210] sm:$0xff]
    %v267 = vld [vmem:[#allocation2 + $0x218] sm:$0xff]
    %v268 = vld [vmem:[#allocation2 + $0x220] sm:$0xff]
    %v269 = vld [vmem:[#allocation2 + $0x228] sm:$0xff]
    %v270 = vld [vmem:[#allocation2 + $0x230] sm:$0xff]
    %v271 = vld [vmem:[#allocation2 + $0x238] sm:$0xff]
    %v272 = vld [vmem:[#allocation2 + $0x240] sm:$0xff]
    %v273 = vld [vmem:[#allocation2 + $0x248] sm:$0xff]
    %v274 = vld [vmem:[#allocation2 + $0x250] sm:$0xff]
    %v275 = vld [vmem:[#allocation2 + $0x258] sm:$0xff]
    %v276 = vld [vmem:[#allocation2 + $0x260] sm:$0xff]
    %v277 = vld [vmem:[#allocation2 + $0x268] sm:$0xff]
    %v278 = vld [vmem:[#allocation2 + $0x270] sm:$0xff]
    %v279 = vld [vmem:[#allocation2 + $0x278] sm:$0xff]
    %v280 = vld [vmem:[#allocation2 + $0x280] sm:$0xff]
    %v281 = vld [vmem:[#allocation2 + $0x288] sm:$0xff]
    %v282 = vld [vmem:[#allocation2 + $0x290] sm:$0xff]
    %v283 = vld [vmem:[#allocation2 + $0x298] sm:$0xff]
    %v284 = vld [vmem:[#allocation2 + $0x2a0] sm:$0xff]
    %v285 = vld [vmem:[#allocation2 + $0x2a8] sm:$0xff]
    %v286 = vld [vmem:[#allocation2 + $0x2b0] sm:$0xff]
    %v287 = vld [vmem:[#allocation2 + $0x2b8] sm:$0xff]
    %v288 = vld [vmem:[#allocation2 + $0x2c0] sm:$0xff]
    %v289 = vld [vmem:[#allocation2 + $0x2c8] sm:$0xff]
    %v290 = vld [vmem:[#allocation2 + $0x2d0] sm:$0xff]
    %v291 = vld [vmem:[#allocation2 + $0x2d8] sm:$0xff]
    %v292 = vld [vmem:[#allocation2 + $0x2e0] sm:$0xff]
    %v293 = vld [vmem:[#allocation2 + $0x2e8] sm:$0xff]
    %v294 = vld [vmem:[#allocation2 + $0x2f0] sm:$0xff]
    %v295 = vld [vmem:[#allocation2 + $0x2f8] sm:$0xff]
    %v296 = vld [vmem:[#allocation2 + $0x300] sm:$0xff]
    %v297 = vld [vmem:[#allocation2 + $0x308] sm:$0xff]
    %v298 = vld [vmem:[#allocation2 + $0x310] sm:$0xff]
    %v299 = vld [vmem:[#allocation2 + $0x318] sm:$0xff]
    %v300 = vld [vmem:[#allocation2 + $0x320] sm:$0xff]
    %v301 = vld [vmem:[#allocation2 + $0x328] sm:$0xff]
    %v302 = vld [vmem:[#allocation2 + $0x330] sm:$0xff]
    %v303 = vld [vmem:[#allocation2 + $0x338] sm:$0xff]
    %v304 = vld [vmem:[#allocation2 + $0x340] sm:$0xff]
    %v305 = vld [vmem:[#allocation2 + $0x348] sm:$0xff]
    %v306 = vld [vmem:[#allocation2 + $0x350] sm:$0xff]
    %v307 = vld [vmem:[#allocation2 + $0x358] sm:$0xff]
    %v308 = vld [vmem:[#allocation2 + $0x360] sm:$0xff]
    %v309 = vld [vmem:[#allocation2 + $0x368] sm:$0xff]
    %v310 = vld [vmem:[#allocation2 + $0x370] sm:$0xff]
    %v311 = vld [vmem:[#allocation2 + $0x378] sm:$0xff]
    %v312 = vld [vmem:[#allocation2 + $0x380] sm:$0xff]
    %v313 = vld [vmem:[#allocation2 + $0x388] sm:$0xff]
    %v314 = vld [vmem:[#allocation3] sm:$0xff]
    %v315 = vld [vmem:[#allocation3 + $0x8] sm:$0xff]
    %v316 = vld [vmem:[#allocation3 + $0x10] sm:$0xff]
    %v317 = vld [vmem:[#allocation3 + $0x18] sm:$0xff]
    %v318 = vld [vmem:[#allocation3 + $0x20] sm:$0xff]
    %v319 = vld [vmem:[#allocation3 + $0x28] sm:$0xff]
    %v320 = vld [vmem:[#allocation3 + $0x30] sm:$0xff]
    %v321 = vld [vmem:[#allocation3 + $0x38] sm:$0xff]
    %v322 = vld [vmem:[#allocation3 + $0x40] sm:$0xff]
    %v323 = vld [vmem:[#allocation3 + $0x48] sm:$0xff]
    %v324 = vld [vmem:[#allocation3 + $0x50] sm:$0xff]
    %v325 = vld [vmem:[#allocation3 + $0x58] sm:$0xff]
    %v326 = vld [vmem:[#allocation3 + $0x60] sm:$0xff]
    %v327 = vld [vmem:[#allocation3 + $0x68] sm:$0xff]
    %v328 = vld [vmem:[#allocation3 + $0x70] sm:$0xff]
    %v329 = vld [vmem:[#allocation3 + $0x78] sm:$0xff]
    %v330 = vld [vmem:[#allocation3 + $0x80] sm:$0xff]
    %v331 = vld [vmem:[#allocation3 + $0x88] sm:$0xff]
    %v332 = vld [vmem:[#allocation3 + $0x90] sm:$0xff]
    %v333 = vld [vmem:[#allocation3 + $0x98] sm:$0xff]
    %v334 = vld [vmem:[#allocation3 + $0xa0] sm:$0xff]
    %v335 = vld [vmem:[#allocation3 + $0xa8] sm:$0xff]
    %v336 = vld [vmem:[#allocation3 + $0xb0] sm:$0xff]
    %v337 = vld [vmem:[#allocation3 + $0xb8] sm:$0xff]
    %v338 = vld [vmem:[#allocation3 + $0xc0] sm:$0xff]
    %v339 = vld [vmem:[#allocation3 + $0xc8] sm:$0xff]
    %v340 = vld [vmem:[#allocation3 + $0xd0] sm:$0xff]
    %v341 = vld [vmem:[#allocation3 + $0xd8] sm:$0xff]
    %v342 = vld [vmem:[#allocation3 + $0xe0] sm:$0xff]
    %v343 = vld [vmem:[#allocation3 + $0xe8] sm:$0xff]
    %v344 = vld [vmem:[#allocation3 + $0xf0] sm:$0xff]
    %v345 = vld [vmem:[#allocation3 + $0xf8] sm:$0xff]
    %v346 = vld [vmem:[#allocation3 + $0x100] sm:$0xff]
    %v347 = vld [vmem:[#allocation3 + $0x108] sm:$0xff]
    %v348 = vld [vmem:[#allocation3 + $0x110] sm:$0xff]
    %v349 = vld [vmem:[#allocation3 + $0x118] sm:$0xff]
    %v350 = vld [vmem:[#allocation3 + $0x120] sm:$0xff]
    %v351 = vld [vmem:[#allocation3 + $0x128] sm:$0xff]
    %v352 = vld [vmem:[#allocation6] sm:$0xff]
    %v353 = vld [vmem:[#allocation6 + $0x8] sm:$0xff]
    %v354 = vld [vmem:[#allocation6 + $0x10] sm:$0xff]
    %v355 = vld [vmem:[#allocation6 + $0x18] sm:$0xff]
    %v356 = vld [vmem:[#allocation6 + $0x20] sm:$0xff]
    %v357 = vld [vmem:[#allocation6 + $0x28] sm:$0xff]
    %v358 = vld [vmem:[#allocation6 + $0x30] sm:$0xff]
    %v359 = vld [vmem:[#allocation6 + $0x38] sm:$0xff]
    %v360 = vld [vmem:[#allocation6 + $0x40] sm:$0xff]
    %v361 = vld [vmem:[#allocation6 + $0x48] sm:$0xff]
    %v362 = vld [vmem:[#allocation6 + $0x50] sm:$0xff]
    %v363 = vld [vmem:[#allocation6 + $0x58] sm:$0xff]
    %v364 = vld [vmem:[#allocation6 + $0x60] sm:$0xff]
    %v365 = vld [vmem:[#allocation6 + $0x68] sm:$0xff]
    %v366 = vld [vmem:[#allocation6 + $0x70] sm:$0xff]
    %v367 = vld [vmem:[#allocation6 + $0x78] sm:$0xff]
    %v368 = vld [vmem:[#allocation6 + $0x80] sm:$0xff]
    %v369 = vld [vmem:[#allocation6 + $0x88] sm:$0xff]
    %v370 = vld [vmem:[#allocation6 + $0x90] sm:$0xff]
    %v371 = vld [vmem:[#allocation6 + $0x98] sm:$0xff]
    %v372 = vld [vmem:[#allocation6 + $0xa0] sm:$0xff]
    %v373 = vld [vmem:[#allocation6 + $0xa8] sm:$0xff]
    %v374 = vld [vmem:[#allocation6 + $0xb0] sm:$0xff]
    %v375 = vld [vmem:[#allocation6 + $0xb8] sm:$0xff]
    %v376 = vld [vmem:[#allocation6 + $0xc0] sm:$0xff]
    %v377 = vld [vmem:[#allocation6 + $0xc8] sm:$0xff]
    %v378 = vld [vmem:[#allocation6 + $0xd0] sm:$0xff]
    %v379 = vld [vmem:[#allocation6 + $0xd8] sm:$0xff]
    %v380 = vld [vmem:[#allocation6 + $0xe0] sm:$0xff]
    %v381 = vld [vmem:[#allocation6 + $0xe8] sm:$0xff]
    %v382 = vld [vmem:[#allocation6 + $0xf0] sm:$0xff]
    %v383 = vld [vmem:[#allocation6 + $0xf8] sm:$0xff]
    %v384 = vld [vmem:[#allocation6 + $0x100] sm:$0xff]
    %v385 = vld [vmem:[#allocation6 + $0x108] sm:$0xff]
    %v386 = vld [vmem:[#allocation6 + $0x110] sm:$0xff]
    %v387 = vld [vmem:[#allocation6 + $0x118] sm:$0xff]
    %v388 = vld [vmem:[#allocation6 + $0x120] sm:$0xff]
    %v389 = vld [vmem:[#allocation6 + $0x128] sm:$0xff]
    %v390 = vld [vmem:[#allocation6 + $0x130] sm:$0xff]
    %v391 = vld [vmem:[#allocation6 + $0x138] sm:$0xff]
    %v392 = vld [vmem:[#allocation6 + $0x140] sm:$0xff]
    %v393 = vld [vmem:[#allocation6 + $0x148] sm:$0xff]
    %v394 = vld [vmem:[#allocation6 + $0x150] sm:$0xff]
    %v395 = vld [vmem:[#allocation6 + $0x158] sm:$0xff]
    %v396 = vld [vmem:[#allocation6 + $0x160] sm:$0xff]
    %v397 = vld [vmem:[#allocation6 + $0x168] sm:$0xff]
    %v398 = vld [vmem:[#allocation6 + $0x170] sm:$0xff]
    %v399 = vld [vmem:[#allocation6 + $0x178] sm:$0xff]
    %400 = vmatpush.msra.mxu0 %v397
    %401 = vmatpush.msra.mxu0 %v394
    %402 = vmatpush.msra.mxu0 %v391
    %403 = vmatpush.msra.mxu0 %v388
    %404 = vmatpush.msra.mxu0 %v385
    %405 = vmatpush.msra.mxu0 %v382
    %406 = vmatpush.msra.mxu0 %v379
    %407 = vmatpush.msra.mxu0 %v376
    %408 = vmatpush.msra.mxu0 %v373
    %409 = vmatpush.msra.mxu0 %v370
    %410 = vmatpush.msra.mxu0 %v367
    %411 = vmatpush.msra.mxu0 %v364
    %412 = vmatpush.msra.mxu0 %v361
    %413 = vmatpush.msra.mxu0 %v358
    %414 = vmatpush.msra.mxu0 %v355
    %415 = vmatpush.msra.mxu0 %v352
    %416 = vmatmul.f32.gmra.mxu0 %v314
    %v417 = vpop.f32.mrf.mxu0
    %v418 = vadd.f32 0.0, %v417
    %419 = vmatmul.f32.gmra.mxu0 %v315
    %v420 = vpop.f32.mrf.mxu0
    %v421 = vadd.f32 0.0, %v420
    %422 = vmatmul.f32.gmra.mxu0 %v316
    %v423 = vpop.f32.mrf.mxu0
    %v424 = vadd.f32 0.0, %v423
    %425 = vmatmul.f32.gmra.mxu0 %v317
    %v426 = vpop.f32.mrf.mxu0
    %v427 = vadd.f32 0.0, %v426
    %428 = vmatmul.f32.gmra.mxu0 %v318
    %v429 = vpop.f32.mrf.mxu0
    %v430 = vadd.f32 0.0, %v429
    %431 = vmatmul.f32.gmra.mxu0 %v319
    %v432 = vpop.f32.mrf.mxu0
    %v433 = vadd.f32 0.0, %v432
    %434 = vmatmul.f32.gmra.mxu0 %v320
    %v435 = vpop.f32.mrf.mxu0
    %v436 = vadd.f32 0.0, %v435
    %437 = vmatmul.f32.gmra.mxu0 %v321
    %v438 = vpop.f32.mrf.mxu0
    %v439 = vadd.f32 0.0, %v438
    %440 = vmatmul.f32.gmra.mxu0 %v322
    %v441 = vpop.f32.mrf.mxu0
    %v442 = vadd.f32 0.0, %v441
    %443 = vmatmul.f32.gmra.mxu0 %v323
    %v444 = vpop.f32.mrf.mxu0
    %v445 = vadd.f32 0.0, %v444
    %446 = vmatmul.f32.gmra.mxu0 %v324
    %v447 = vpop.f32.mrf.mxu0
    %v448 = vadd.f32 0.0, %v447
    %449 = vmatmul.f32.gmra.mxu0 %v325
    %v450 = vpop.f32.mrf.mxu0
    %v451 = vadd.f32 0.0, %v450
    %452 = vmatmul.f32.gmra.mxu0 %v326
    %v453 = vpop.f32.mrf.mxu0
    %v454 = vadd.f32 0.0, %v453
    %455 = vmatmul.f32.gmra.mxu0 %v327
    %v456 = vpop.f32.mrf.mxu0
    %v457 = vadd.f32 0.0, %v456
    %458 = vmatmul.f32.gmra.mxu0 %v328
    %v459 = vpop.f32.mrf.mxu0
    %v460 = vadd.f32 0.0, %v459
    %461 = vmatmul.f32.gmra.mxu0 %v329
    %v462 = vpop.f32.mrf.mxu0
    %v463 = vadd.f32 0.0, %v462
    %464 = vmatmul.f32.gmra.mxu0 %v330
    %v465 = vpop.f32.mrf.mxu0
    %v466 = vadd.f32 0.0, %v465
    %467 = vmatmul.f32.gmra.mxu0 %v331
    %v468 = vpop.f32.mrf.mxu0
    %v469 = vadd.f32 0.0, %v468
    %470 = vmatmul.f32.gmra.mxu0 %v332
    %v471 = vpop.f32.mrf.mxu0
    %v472 = vadd.f32 0.0, %v471
    %473 = vmatmul.f32.gmra.mxu0 %v333
    %v474 = vpop.f32.mrf.mxu0
    %v475 = vadd.f32 0.0, %v474
    %476 = vmatmul.f32.gmra.mxu0 %v334
    %v477 = vpop.f32.mrf.mxu0
    %v478 = vadd.f32 0.0, %v477
    %479 = vmatmul.f32.gmra.mxu0 %v335
    %v480 = vpop.f32.mrf.mxu0
    %v481 = vadd.f32 0.0, %v480
    %482 = vmatmul.f32.gmra.mxu0 %v336
    %v483 = vpop.f32.mrf.mxu0
    %v484 = vadd.f32 0.0, %v483
    %485 = vmatmul.f32.gmra.mxu0 %v337
    %v486 = vpop.f32.mrf.mxu0
    %v487 = vadd.f32 0.0, %v486
    %488 = vmatmul.f32.gmra.mxu0 %v338
    %v489 = vpop.f32.mrf.mxu0
    %v490 = vadd.f32 0.0, %v489
    %491 = vmatmul.f32.gmra.mxu0 %v339
    %v492 = vpop.f32.mrf.mxu0
    %v493 = vadd.f32 0.0, %v492
    %494 = vmatmul.f32.gmra.mxu0 %v340
    %v495 = vpop.f32.mrf.mxu0
    %v496 = vadd.f32 0.0, %v495
    %497 = vmatmul.f32.gmra.mxu0 %v341
    %v498 = vpop.f32.mrf.mxu0
    %v499 = vadd.f32 0.0, %v498
    %500 = vmatmul.f32.gmra.mxu0 %v342
    %v501 = vpop.f32.mrf.mxu0
    %v502 = vadd.f32 0.0, %v501
    %503 = vmatmul.f32.gmra.mxu0 %v343
    %v504 = vpop.f32.mrf.mxu0
    %v505 = vadd.f32 0.0, %v504
    %506 = vmatmul.f32.gmra.mxu0 %v344
    %v507 = vpop.f32.mrf.mxu0
    %v508 = vadd.f32 0.0, %v507
    %509 = vmatmul.f32.gmra.mxu0 %v345
    %v510 = vpop.f32.mrf.mxu0
    %v511 = vadd.f32 0.0, %v510
    %512 = vmatmul.f32.gmra.mxu0 %v346
    %v513 = vpop.f32.mrf.mxu0
    %v514 = vadd.f32 0.0, %v513
    %515 = vmatmul.f32.gmra.mxu0 %v347
    %v516 = vpop.f32.mrf.mxu0
    %v517 = vadd.f32 0.0, %v516
    %518 = vmatmul.f32.gmra.mxu0 %v348
    %v519 = vpop.f32.mrf.mxu0
    %v520 = vadd.f32 0.0, %v519
    %521 = vmatmul.f32.gmra.mxu0 %v349
    %v522 = vpop.f32.mrf.mxu0
    %v523 = vadd.f32 0.0, %v522
    %524 = vmatmul.f32.gmra.mxu0 %v350
    %v525 = vpop.f32.mrf.mxu0
    %v526 = vadd.f32 0.0, %v525
    %527 = vmatmul.f32.gmra.mxu0 %v351
    %v528 = vpop.f32.mrf.mxu0
    %v529 = vadd.f32 0.0, %v528
    %530 = vdwg.mxu0
    %531 = vmatpush.msra.mxu0 %v398
    %532 = vmatpush.msra.mxu0 %v395
    %533 = vmatpush.msra.mxu0 %v392
    %534 = vmatpush.msra.mxu0 %v389
    %535 = vmatpush.msra.mxu0 %v386
    %536 = vmatpush.msra.mxu0 %v383
    %537 = vmatpush.msra.mxu0 %v380
    %538 = vmatpush.msra.mxu0 %v377
    %539 = vmatpush.msra.mxu0 %v374
    %540 = vmatpush.msra.mxu0 %v371
    %541 = vmatpush.msra.mxu0 %v368
    %542 = vmatpush.msra.mxu0 %v365
    %543 = vmatpush.msra.mxu0 %v362
    %544 = vmatpush.msra.mxu0 %v359
    %545 = vmatpush.msra.mxu0 %v356
    %546 = vmatpush.msra.mxu0 %v353
    %547 = vmatmul.f32.gmra.mxu0 %v314
    %v548 = vpop.f32.mrf.mxu0
    %v549 = vadd.f32 0.0, %v548
    %550 = vmatmul.f32.gmra.mxu0 %v315
    %v551 = vpop.f32.mrf.mxu0
    %v552 = vadd.f32 0.0, %v551
    %553 = vmatmul.f32.gmra.mxu0 %v316
    %v554 = vpop.f32.mrf.mxu0
    %v555 = vadd.f32 0.0, %v554
    %556 = vmatmul.f32.gmra.mxu0 %v317
    %v557 = vpop.f32.mrf.mxu0
    %v558 = vadd.f32 0.0, %v557
    %559 = vmatmul.f32.gmra.mxu0 %v318
    %v560 = vpop.f32.mrf.mxu0
    %v561 = vadd.f32 0.0, %v560
    %562 = vmatmul.f32.gmra.mxu0 %v319
    %v563 = vpop.f32.mrf.mxu0
    %v564 = vadd.f32 0.0, %v563
    %565 = vmatmul.f32.gmra.mxu0 %v320
    %v566 = vpop.f32.mrf.mxu0
    %v567 = vadd.f32 0.0, %v566
    %568 = vmatmul.f32.gmra.mxu0 %v321
    %v569 = vpop.f32.mrf.mxu0
    %v570 = vadd.f32 0.0, %v569
    %571 = vmatmul.f32.gmra.mxu0 %v322
    %v572 = vpop.f32.mrf.mxu0
    %v573 = vadd.f32 0.0, %v572
    %574 = vmatmul.f32.gmra.mxu0 %v323
    %v575 = vpop.f32.mrf.mxu0
    %v576 = vadd.f32 0.0, %v575
    %577 = vmatmul.f32.gmra.mxu0 %v324
    %v578 = vpop.f32.mrf.mxu0
    %v579 = vadd.f32 0.0, %v578
    %580 = vmatmul.f32.gmra.mxu0 %v325
    %v581 = vpop.f32.mrf.mxu0
    %v582 = vadd.f32 0.0, %v581
    %583 = vmatmul.f32.gmra.mxu0 %v326
    %v584 = vpop.f32.mrf.mxu0
    %v585 = vadd.f32 0.0, %v584
    %586 = vmatmul.f32.gmra.mxu0 %v327
    %v587 = vpop.f32.mrf.mxu0
    %v588 = vadd.f32 0.0, %v587
    %589 = vmatmul.f32.gmra.mxu0 %v328
    %v590 = vpop.f32.mrf.mxu0
    %v591 = vadd.f32 0.0, %v590
    %592 = vmatmul.f32.gmra.mxu0 %v329
    %v593 = vpop.f32.mrf.mxu0
    %v594 = vadd.f32 0.0, %v593
    %595 = vmatmul.f32.gmra.mxu0 %v330
    %v596 = vpop.f32.mrf.mxu0
    %v597 = vadd.f32 0.0, %v596
    %598 = vmatmul.f32.gmra.mxu0 %v331
    %v599 = vpop.f32.mrf.mxu0
    %v600 = vadd.f32 0.0, %v599
    %601 = vmatmul.f32.gmra.mxu0 %v332
    %v602 = vpop.f32.mrf.mxu0
    %v603 = vadd.f32 0.0, %v602
    %604 = vmatmul.f32.gmra.mxu0 %v333
    %v605 = vpop.f32.mrf.mxu0
    %v606 = vadd.f32 0.0, %v605
    %607 = vmatmul.f32.gmra.mxu0 %v334
    %v608 = vpop.f32.mrf.mxu0
    %v609 = vadd.f32 0.0, %v608
    %610 = vmatmul.f32.gmra.mxu0 %v335
    %v611 = vpop.f32.mrf.mxu0
    %v612 = vadd.f32 0.0, %v611
    %613 = vmatmul.f32.gmra.mxu0 %v336
    %v614 = vpop.f32.mrf.mxu0
    %v615 = vadd.f32 0.0, %v614
    %616 = vmatmul.f32.gmra.mxu0 %v337
    %v617 = vpop.f32.mrf.mxu0
    %v618 = vadd.f32 0.0, %v617
    %619 = vmatmul.f32.gmra.mxu0 %v338
    %v620 = vpop.f32.mrf.mxu0
    %v621 = vadd.f32 0.0, %v620
    %622 = vmatmul.f32.gmra.mxu0 %v339
    %v623 = vpop.f32.mrf.mxu0
    %v624 = vadd.f32 0.0, %v623
    %625 = vmatmul.f32.gmra.mxu0 %v340
    %v626 = vpop.f32.mrf.mxu0
    %v627 = vadd.f32 0.0, %v626
    %628 = vmatmul.f32.gmra.mxu0 %v341
    %v629 = vpop.f32.mrf.mxu0
    %v630 = vadd.f32 0.0, %v629
    %631 = vmatmul.f32.gmra.mxu0 %v342
    %v632 = vpop.f32.mrf.mxu0
    %v633 = vadd.f32 0.0, %v632
    %634 = vmatmul.f32.gmra.mxu0 %v343
    %v635 = vpop.f32.mrf.mxu0
    %v636 = vadd.f32 0.0, %v635
    %637 = vmatmul.f32.gmra.mxu0 %v344
    %v638 = vpop.f32.mrf.mxu0
    %v639 = vadd.f32 0.0, %v638
    %640 = vmatmul.f32.gmra.mxu0 %v345
    %v641 = vpop.f32.mrf.mxu0
    %v642 = vadd.f32 0.0, %v641
    %643 = vmatmul.f32.gmra.mxu0 %v346
    %v644 = vpop.f32.mrf.mxu0
    %v645 = vadd.f32 0.0, %v644
    %646 = vmatmul.f32.gmra.mxu0 %v347
    %v647 = vpop.f32.mrf.mxu0
    %v648 = vadd.f32 0.0, %v647
    %649 = vmatmul.f32.gmra.mxu0 %v348
    %v650 = vpop.f32.mrf.mxu0
    %v651 = vadd.f32 0.0, %v650
    %652 = vmatmul.f32.gmra.mxu0 %v349
    %v653 = vpop.f32.mrf.mxu0
    %v654 = vadd.f32 0.0, %v653
    %655 = vmatmul.f32.gmra.mxu0 %v350
    %v656 = vpop.f32.mrf.mxu0
    %v657 = vadd.f32 0.0, %v656
    %658 = vmatmul.f32.gmra.mxu0 %v351
    %v659 = vpop.f32.mrf.mxu0
    %v660 = vadd.f32 0.0, %v659
    %661 = vdwg.mxu0
    %662 = vmatpush.msra.mxu0 %v399
    %663 = vmatpush.msra.mxu0 %v396
    %664 = vmatpush.msra.mxu0 %v393
    %665 = vmatpush.msra.mxu0 %v390
    %666 = vmatpush.msra.mxu0 %v387
    %667 = vmatpush.msra.mxu0 %v384
    %668 = vmatpush.msra.mxu0 %v381
    %669 = vmatpush.msra.mxu0 %v378
    %670 = vmatpush.msra.mxu0 %v375
    %671 = vmatpush.msra.mxu0 %v372
    %672 = vmatpush.msra.mxu0 %v369
    %673 = vmatpush.msra.mxu0 %v366
    %674 = vmatpush.msra.mxu0 %v363
    %675 = vmatpush.msra.mxu0 %v360
    %676 = vmatpush.msra.mxu0 %v357
    %677 = vmatpush.msra.mxu0 %v354
    %678 = vmatmul.f32.gmra.mxu0 %v314
    %v679 = vpop.f32.mrf.mxu0
    %v680 = vadd.f32 0.0, %v679
    %681 = vmatmul.f32.gmra.mxu0 %v315
    %v682 = vpop.f32.mrf.mxu0
    %v683 = vadd.f32 0.0, %v682
    %684 = vmatmul.f32.gmra.mxu0 %v316
    %v685 = vpop.f32.mrf.mxu0
    %v686 = vadd.f32 0.0, %v685
    %687 = vmatmul.f32.gmra.mxu0 %v317
    %v688 = vpop.f32.mrf.mxu0
    %v689 = vadd.f32 0.0, %v688
    %690 = vmatmul.f32.gmra.mxu0 %v318
    %v691 = vpop.f32.mrf.mxu0
    %v692 = vadd.f32 0.0, %v691
    %693 = vmatmul.f32.gmra.mxu0 %v319
    %v694 = vpop.f32.mrf.mxu0
    %v695 = vadd.f32 0.0, %v694
    %696 = vmatmul.f32.gmra.mxu0 %v320
    %v697 = vpop.f32.mrf.mxu0
    %v698 = vadd.f32 0.0, %v697
    %699 = vmatmul.f32.gmra.mxu0 %v321
    %v700 = vpop.f32.mrf.mxu0
    %v701 = vadd.f32 0.0, %v700
    %702 = vmatmul.f32.gmra.mxu0 %v322
    %v703 = vpop.f32.mrf.mxu0
    %v704 = vadd.f32 0.0, %v703
    %705 = vmatmul.f32.gmra.mxu0 %v323
    %v706 = vpop.f32.mrf.mxu0
    %v707 = vadd.f32 0.0, %v706
    %708 = vmatmul.f32.gmra.mxu0 %v324
    %v709 = vpop.f32.mrf.mxu0
    %v710 = vadd.f32 0.0, %v709
    %711 = vmatmul.f32.gmra.mxu0 %v325
    %v712 = vpop.f32.mrf.mxu0
    %v713 = vadd.f32 0.0, %v712
    %714 = vmatmul.f32.gmra.mxu0 %v326
    %v715 = vpop.f32.mrf.mxu0
    %v716 = vadd.f32 0.0, %v715
    %717 = vmatmul.f32.gmra.mxu0 %v327
    %v718 = vpop.f32.mrf.mxu0
    %v719 = vadd.f32 0.0, %v718
    %720 = vmatmul.f32.gmra.mxu0 %v328
    %v721 = vpop.f32.mrf.mxu0
    %v722 = vadd.f32 0.0, %v721
    %723 = vmatmul.f32.gmra.mxu0 %v329
    %v724 = vpop.f32.mrf.mxu0
    %v725 = vadd.f32 0.0, %v724
    %726 = vmatmul.f32.gmra.mxu0 %v330
    %v727 = vpop.f32.mrf.mxu0
    %v728 = vadd.f32 0.0, %v727
    %729 = vmatmul.f32.gmra.mxu0 %v331
    %v730 = vpop.f32.mrf.mxu0
    %v731 = vadd.f32 0.0, %v730
    %732 = vmatmul.f32.gmra.mxu0 %v332
    %v733 = vpop.f32.mrf.mxu0
    %v734 = vadd.f32 0.0, %v733
    %735 = vmatmul.f32.gmra.mxu0 %v333
    %v736 = vpop.f32.mrf.mxu0
    %v737 = vadd.f32 0.0, %v736
    %738 = vmatmul.f32.gmra.mxu0 %v334
    %v739 = vpop.f32.mrf.mxu0
    %v740 = vadd.f32 0.0, %v739
    %741 = vmatmul.f32.gmra.mxu0 %v335
    %v742 = vpop.f32.mrf.mxu0
    %v743 = vadd.f32 0.0, %v742
    %744 = vmatmul.f32.gmra.mxu0 %v336
    %v745 = vpop.f32.mrf.mxu0
    %v746 = vadd.f32 0.0, %v745
    %747 = vmatmul.f32.gmra.mxu0 %v337
    %v748 = vpop.f32.mrf.mxu0
    %v749 = vadd.f32 0.0, %v748
    %750 = vmatmul.f32.gmra.mxu0 %v338
    %v751 = vpop.f32.mrf.mxu0
    %v752 = vadd.f32 0.0, %v751
    %753 = vmatmul.f32.gmra.mxu0 %v339
    %v754 = vpop.f32.mrf.mxu0
    %v755 = vadd.f32 0.0, %v754
    %756 = vmatmul.f32.gmra.mxu0 %v340
    %v757 = vpop.f32.mrf.mxu0
    %v758 = vadd.f32 0.0, %v757
    %759 = vmatmul.f32.gmra.mxu0 %v341
    %v760 = vpop.f32.mrf.mxu0
    %v761 = vadd.f32 0.0, %v760
    %762 = vmatmul.f32.gmra.mxu0 %v342
    %v763 = vpop.f32.mrf.mxu0
    %v764 = vadd.f32 0.0, %v763
    %765 = vmatmul.f32.gmra.mxu0 %v343
    %v766 = vpop.f32.mrf.mxu0
    %v767 = vadd.f32 0.0, %v766
    %768 = vmatmul.f32.gmra.mxu0 %v344
    %v769 = vpop.f32.mrf.mxu0
    %v770 = vadd.f32 0.0, %v769
    %771 = vmatmul.f32.gmra.mxu0 %v345
    %v772 = vpop.f32.mrf.mxu0
    %v773 = vadd.f32 0.0, %v772
    %774 = vmatmul.f32.gmra.mxu0 %v346
    %v775 = vpop.f32.mrf.mxu0
    %v776 = vadd.f32 0.0, %v775
    %777 = vmatmul.f32.gmra.mxu0 %v347
    %v778 = vpop.f32.mrf.mxu0
    %v779 = vadd.f32 0.0, %v778
    %780 = vmatmul.f32.gmra.mxu0 %v348
    %v781 = vpop.f32.mrf.mxu0
    %v782 = vadd.f32 0.0, %v781
    %783 = vmatmul.f32.gmra.mxu0 %v349
    %v784 = vpop.f32.mrf.mxu0
    %v785 = vadd.f32 0.0, %v784
    %786 = vmatmul.f32.gmra.mxu0 %v350
    %v787 = vpop.f32.mrf.mxu0
    %v788 = vadd.f32 0.0, %v787
    %789 = vmatmul.f32.gmra.mxu0 %v351
    %v790 = vpop.f32.mrf.mxu0
    %v791 = vadd.f32 0.0, %v790
    %792 = vdwg.mxu0
    %v793 = vadd.f32 %v200, %v418
    %v794 = vadd.f32 %v201, %v549
    %v795 = vadd.f32 %v202, %v680
    %v796 = vadd.f32 %v203, %v421
    %v797 = vadd.f32 %v204, %v552
    %v798 = vadd.f32 %v205, %v683
    %v799 = vadd.f32 %v206, %v424
    %v800 = vadd.f32 %v207, %v555
    %v801 = vadd.f32 %v208, %v686
    %v802 = vadd.f32 %v209, %v427
    %v803 = vadd.f32 %v210, %v558
    %v804 = vadd.f32 %v211, %v689
    %v805 = vadd.f32 %v212, %v430
    %v806 = vadd.f32 %v213, %v561
    %v807 = vadd.f32 %v214, %v692
    %v808 = vadd.f32 %v215, %v433
    %v809 = vadd.f32 %v216, %v564
    %v810 = vadd.f32 %v217, %v695
    %v811 = vadd.f32 %v218, %v436
    %v812 = vadd.f32 %v219, %v567
    %v813 = vadd.f32 %v220, %v698
    %v814 = vadd.f32 %v221, %v439
    %v815 = vadd.f32 %v222, %v570
    %v816 = vadd.f32 %v223, %v701
    %v817 = vadd.f32 %v224, %v442
    %v818 = vadd.f32 %v225, %v573
    %v819 = vadd.f32 %v226, %v704
    %v820 = vadd.f32 %v227, %v445
    %v821 = vadd.f32 %v228, %v576
    %v822 = vadd.f32 %v229, %v707
    %v823 = vadd.f32 %v230, %v448
    %v824 = vadd.f32 %v231, %v579
    %v825 = vadd.f32 %v232, %v710
    %v826 = vadd.f32 %v233, %v451
    %v827 = vadd.f32 %v234, %v582
    %v828 = vadd.f32 %v235, %v713
    %v829 = vadd.f32 %v236, %v454
    %v830 = vadd.f32 %v237, %v585
    %v831 = vadd.f32 %v238, %v716
    %v832 = vadd.f32 %v239, %v457
    %v833 = vadd.f32 %v240, %v588
    %v834 = vadd.f32 %v241, %v719
    %v835 = vadd.f32 %v242, %v460
    %v836 = vadd.f32 %v243, %v591
    %v837 = vadd.f32 %v244, %v722
    %v838 = vadd.f32 %v245, %v463
    %v839 = vadd.f32 %v246, %v594
    %v840 = vadd.f32 %v247, %v725
    %v841 = vadd.f32 %v248, %v466
    %v842 = vadd.f32 %v249, %v597
    %v843 = vadd.f32 %v250, %v728
    %v844 = vadd.f32 %v251, %v469
    %v845 = vadd.f32 %v252, %v600
    %v846 = vadd.f32 %v253, %v731
    %v847 = vadd.f32 %v254, %v472
    %v848 = vadd.f32 %v255, %v603
    %v849 = vadd.f32 %v256, %v734
    %v850 = vadd.f32 %v257, %v475
    %v851 = vadd.f32 %v258, %v606
    %v852 = vadd.f32 %v259, %v737
    %v853 = vadd.f32 %v260, %v478
    %v854 = vadd.f32 %v261, %v609
    %v855 = vadd.f32 %v262, %v740
    %v856 = vadd.f32 %v263, %v481
    %v857 = vadd.f32 %v264, %v612
    %v858 = vadd.f32 %v265, %v743
    %v859 = vadd.f32 %v266, %v484
    %v860 = vadd.f32 %v267, %v615
    %v861 = vadd.f32 %v268, %v746
    %v862 = vadd.f32 %v269, %v487
    %v863 = vadd.f32 %v270, %v618
    %v864 = vadd.f32 %v271, %v749
    %v865 = vadd.f32 %v272, %v490
    %v866 = vadd.f32 %v273, %v621
    %v867 = vadd.f32 %v274, %v752
    %v868 = vadd.f32 %v275, %v493
    %v869 = vadd.f32 %v276, %v624
    %v870 = vadd.f32 %v277, %v755
    %v871 = vadd.f32 %v278, %v496
    %v872 = vadd.f32 %v279, %v627
    %v873 = vadd.f32 %v280, %v758
    %v874 = vadd.f32 %v281, %v499
    %v875 = vadd.f32 %v282, %v630
    %v876 = vadd.f32 %v283, %v761
    %v877 = vadd.f32 %v284, %v502
    %v878 = vadd.f32 %v285, %v633
    %v879 = vadd.f32 %v286, %v764
    %v880 = vadd.f32 %v287, %v505
    %v881 = vadd.f32 %v288, %v636
    %v882 = vadd.f32 %v289, %v767
    %v883 = vadd.f32 %v290, %v508
    %v884 = vadd.f32 %v291, %v639
    %v885 = vadd.f32 %v292, %v770
    %v886 = vadd.f32 %v293, %v511
    %v887 = vadd.f32 %v294, %v642
    %v888 = vadd.f32 %v295, %v773
    %v889 = vadd.f32 %v296, %v514
    %v890 = vadd.f32 %v297, %v645
    %v891 = vadd.f32 %v298, %v776
    %v892 = vadd.f32 %v299, %v517
    %v893 = vadd.f32 %v300, %v648
    %v894 = vadd.f32 %v301, %v779
    %v895 = vadd.f32 %v302, %v520
    %v896 = vadd.f32 %v303, %v651
    %v897 = vadd.f32 %v304, %v782
    %v898 = vadd.f32 %v305, %v523
    %v899 = vadd.f32 %v306, %v654
    %v900 = vadd.f32 %v307, %v785
    %v901 = vadd.f32 %v308, %v526
    %v902 = vadd.f32 %v309, %v657
    %v903 = vadd.f32 %v310, %v788
    %v904 = vadd.f32 %v311, %v529
    %v905 = vadd.f32 %v312, %v660
    %v906 = vadd.f32 %v313, %v791
    %907 = vst [vmem:[#allocation2] sm:$0xff] %v793
    %908 = vst [vmem:[#allocation2 + $0x8] sm:$0xff] %v794
    %909 = vst [vmem:[#allocation2 + $0x10] sm:$0xff] %v795
    %910 = vst [vmem:[#allocation2 + $0x18] sm:$0xff] %v796
    %911 = vst [vmem:[#allocation2 + $0x20] sm:$0xff] %v797
    %912 = vst [vmem:[#allocation2 + $0x28] sm:$0xff] %v798
    %913 = vst [vmem:[#allocation2 + $0x30] sm:$0xff] %v799
    %914 = vst [vmem:[#allocation2 + $0x38] sm:$0xff] %v800
    %915 = vst [vmem:[#allocation2 + $0x40] sm:$0xff] %v801
    %916 = vst [vmem:[#allocation2 + $0x48] sm:$0xff] %v802
    %917 = vst [vmem:[#allocation2 + $0x50] sm:$0xff] %v803
    %918 = vst [vmem:[#allocation2 + $0x58] sm:$0xff] %v804
    %919 = vst [vmem:[#allocation2 + $0x60] sm:$0xff] %v805
    %920 = vst [vmem:[#allocation2 + $0x68] sm:$0xff] %v806
    %921 = vst [vmem:[#allocation2 + $0x70] sm:$0xff] %v807
    %922 = vst [vmem:[#allocation2 + $0x78] sm:$0xff] %v808
    %923 = vst [vmem:[#allocation2 + $0x80] sm:$0xff] %v809
    %924 = vst [vmem:[#allocation2 + $0x88] sm:$0xff] %v810
    %925 = vst [vmem:[#allocation2 + $0x90] sm:$0xff] %v811
    %926 = vst [vmem:[#allocation2 + $0x98] sm:$0xff] %v812
    %927 = vst [vmem:[#allocation2 + $0xa0] sm:$0xff] %v813
    %928 = vst [vmem:[#allocation2 + $0xa8] sm:$0xff] %v814
    %929 = vst [vmem:[#allocation2 + $0xb0] sm:$0xff] %v815
    %930 = vst [vmem:[#allocation2 + $0xb8] sm:$0xff] %v816
    %931 = vst [vmem:[#allocation2 + $0xc0] sm:$0xff] %v817
    %932 = vst [vmem:[#allocation2 + $0xc8] sm:$0xff] %v818
    %933 = vst [vmem:[#allocation2 + $0xd0] sm:$0xff] %v819
    %934 = vst [vmem:[#allocation2 + $0xd8] sm:$0xff] %v820
    %935 = vst [vmem:[#allocation2 + $0xe0] sm:$0xff] %v821
    %936 = vst [vmem:[#allocation2 + $0xe8] sm:$0xff] %v822
    %937 = vst [vmem:[#allocation2 + $0xf0] sm:$0xff] %v823
    %938 = vst [vmem:[#allocation2 + $0xf8] sm:$0xff] %v824
    %939 = vst [vmem:[#allocation2 + $0x100] sm:$0xff] %v825
    %940 = vst [vmem:[#allocation2 + $0x108] sm:$0xff] %v826
    %941 = vst [vmem:[#allocation2 + $0x110] sm:$0xff] %v827
    %942 = vst [vmem:[#allocation2 + $0x118] sm:$0xff] %v828
    %943 = vst [vmem:[#allocation2 + $0x120] sm:$0xff] %v829
    %944 = vst [vmem:[#allocation2 + $0x128] sm:$0xff] %v830
    %945 = vst [vmem:[#allocation2 + $0x130] sm:$0xff] %v831
    %946 = vst [vmem:[#allocation2 + $0x138] sm:$0xff] %v832
    %947 = vst [vmem:[#allocation2 + $0x140] sm:$0xff] %v833
    %948 = vst [vmem:[#allocation2 + $0x148] sm:$0xff] %v834
    %949 = vst [vmem:[#allocation2 + $0x150] sm:$0xff] %v835
    %950 = vst [vmem:[#allocation2 + $0x158] sm:$0xff] %v836
    %951 = vst [vmem:[#allocation2 + $0x160] sm:$0xff] %v837
    %952 = vst [vmem:[#allocation2 + $0x168] sm:$0xff] %v838
    %953 = vst [vmem:[#allocation2 + $0x170] sm:$0xff] %v839
    %954 = vst [vmem:[#allocation2 + $0x178] sm:$0xff] %v840
    %955 = vst [vmem:[#allocation2 + $0x180] sm:$0xff] %v841
    %956 = vst [vmem:[#allocation2 + $0x188] sm:$0xff] %v842
    %957 = vst [vmem:[#allocation2 + $0x190] sm:$0xff] %v843
    %958 = vst [vmem:[#allocation2 + $0x198] sm:$0xff] %v844
    %959 = vst [vmem:[#allocation2 + $0x1a0] sm:$0xff] %v845
    %960 = vst [vmem:[#allocation2 + $0x1a8] sm:$0xff] %v846
    %961 = vst [vmem:[#allocation2 + $0x1b0] sm:$0xff] %v847
    %962 = vst [vmem:[#allocation2 + $0x1b8] sm:$0xff] %v848
    %963 = vst [vmem:[#allocation2 + $0x1c0] sm:$0xff] %v849
    %964 = vst [vmem:[#allocation2 + $0x1c8] sm:$0xff] %v850
    %965 = vst [vmem:[#allocation2 + $0x1d0] sm:$0xff] %v851
    %966 = vst [vmem:[#allocation2 + $0x1d8] sm:$0xff] %v852
    %967 = vst [vmem:[#allocation2 + $0x1e0] sm:$0xff] %v853
    %968 = vst [vmem:[#allocation2 + $0x1e8] sm:$0xff] %v854
    %969 = vst [vmem:[#allocation2 + $0x1f0] sm:$0xff] %v855
    %970 = vst [vmem:[#allocation2 + $0x1f8] sm:$0xff] %v856
    %971 = vst [vmem:[#allocation2 + $0x200] sm:$0xff] %v857
    %972 = vst [vmem:[#allocation2 + $0x208] sm:$0xff] %v858
    %973 = vst [vmem:[#allocation2 + $0x210] sm:$0xff] %v859
    %974 = vst [vmem:[#allocation2 + $0x218] sm:$0xff] %v860
    %975 = vst [vmem:[#allocation2 + $0x220] sm:$0xff] %v861
    %976 = vst [vmem:[#allocation2 + $0x228] sm:$0xff] %v862
    %977 = vst [vmem:[#allocation2 + $0x230] sm:$0xff] %v863
    %978 = vst [vmem:[#allocation2 + $0x238] sm:$0xff] %v864
    %979 = vst [vmem:[#allocation2 + $0x240] sm:$0xff] %v865
    %980 = vst [vmem:[#allocation2 + $0x248] sm:$0xff] %v866
    %981 = vst [vmem:[#allocation2 + $0x250] sm:$0xff] %v867
    %982 = vst [vmem:[#allocation2 + $0x258] sm:$0xff] %v868
    %983 = vst [vmem:[#allocation2 + $0x260] sm:$0xff] %v869
    %984 = vst [vmem:[#allocation2 + $0x268] sm:$0xff] %v870
    %985 = vst [vmem:[#allocation2 + $0x270] sm:$0xff] %v871
    %986 = vst [vmem:[#allocation2 + $0x278] sm:$0xff] %v872
    %987 = vst [vmem:[#allocation2 + $0x280] sm:$0xff] %v873
    %988 = vst [vmem:[#allocation2 + $0x288] sm:$0xff] %v874
    %989 = vst [vmem:[#allocation2 + $0x290] sm:$0xff] %v875
    %990 = vst [vmem:[#allocation2 + $0x298] sm:$0xff] %v876
    %991 = vst [vmem:[#allocation2 + $0x2a0] sm:$0xff] %v877
    %992 = vst [vmem:[#allocation2 + $0x2a8] sm:$0xff] %v878
    %993 = vst [vmem:[#allocation2 + $0x2b0] sm:$0xff] %v879
    %994 = vst [vmem:[#allocation2 + $0x2b8] sm:$0xff] %v880
    %995 = vst [vmem:[#allocation2 + $0x2c0] sm:$0xff] %v881
    %996 = vst [vmem:[#allocation2 + $0x2c8] sm:$0xff] %v882
    %997 = vst [vmem:[#allocation2 + $0x2d0] sm:$0xff] %v883
    %998 = vst [vmem:[#allocation2 + $0x2d8] sm:$0xff] %v884
    %999 = vst [vmem:[#allocation2 + $0x2e0] sm:$0xff] %v885
    %1000 = vst [vmem:[#allocation2 + $0x2e8] sm:$0xff] %v886
    %1001 = vst [vmem:[#allocation2 + $0x2f0] sm:$0xff] %v887
    %1002 = vst [vmem:[#allocation2 + $0x2f8] sm:$0xff] %v888
    %1003 = vst [vmem:[#allocation2 + $0x300] sm:$0xff] %v889
    %1004 = vst [vmem:[#allocation2 + $0x308] sm:$0xff] %v890
    %1005 = vst [vmem:[#allocation2 + $0x310] sm:$0xff] %v891
    %1006 = vst [vmem:[#allocation2 + $0x318] sm:$0xff] %v892
    %1007 = vst [vmem:[#allocation2 + $0x320] sm:$0xff] %v893
    %1008 = vst [vmem:[#allocation2 + $0x328] sm:$0xff] %v894
    %1009 = vst [vmem:[#allocation2 + $0x330] sm:$0xff] %v895
    %1010 = vst [vmem:[#allocation2 + $0x338] sm:$0xff] %v896
    %1011 = vst [vmem:[#allocation2 + $0x340] sm:$0xff] %v897
    %1012 = vst [vmem:[#allocation2 + $0x348] sm:$0xff] %v898
    %1013 = vst [vmem:[#allocation2 + $0x350] sm:$0xff] %v899
    %1014 = vst [vmem:[#allocation2 + $0x358] sm:$0xff] %v900
    %1015 = vst [vmem:[#allocation2 + $0x360] sm:$0xff] %v901
    %1016 = vst [vmem:[#allocation2 + $0x368] sm:$0xff] %v902
    %1017 = vst [vmem:[#allocation2 + $0x370] sm:$0xff] %v903
    %1018 = vst [vmem:[#allocation2 + $0x378] sm:$0xff] %v904
    %1019 = vst [vmem:[#allocation2 + $0x380] sm:$0xff] %v905
    %1020 = vst [vmem:[#allocation2 + $0x388] sm:$0xff] %v906
    // Predicated region
    $region42: #{tpu_custom_call.1} parent=1 // pred_check
      %p1021 = pneg %p82
    $region43: #{tpu_custom_call.1} parent=1 // pred_check_branch
      %1023 = sbr.rel (%p1021) target = $region45
    $region44: #{tpu_custom_call.1} parent=1 // pred_region
      %v1024 = vld [vmem:[#allocation2] sm:$0xff]
      %v1025 = vld [vmem:[#allocation2 + $0x8] sm:$0xff]
      %v1026 = vld [vmem:[#allocation2 + $0x10] sm:$0xff]
      %v1027 = vld [vmem:[#allocation2 + $0x18] sm:$0xff]
      %v1028 = vld [vmem:[#allocation2 + $0x20] sm:$0xff]
      %v1029 = vld [vmem:[#allocation2 + $0x28] sm:$0xff]
      %v1030 = vld [vmem:[#allocation2 + $0x30] sm:$0xff]
      %v1031 = vld [vmem:[#allocation2 + $0x38] sm:$0xff]
      %v1032 = vld [vmem:[#allocation2 + $0x40] sm:$0xff]
      %v1033 = vld [vmem:[#allocation2 + $0x48] sm:$0xff]
      %v1034 = vld [vmem:[#allocation2 + $0x50] sm:$0xff]
      %v1035 = vld [vmem:[#allocation2 + $0x58] sm:$0xff]
      %v1036 = vld [vmem:[#allocation2 + $0x60] sm:$0xff]
      %v1037 = vld [vmem:[#allocation2 + $0x68] sm:$0xff]
      %v1038 = vld [vmem:[#allocation2 + $0x70] sm:$0xff]
      %v1039 = vld [vmem:[#allocation2 + $0x78] sm:$0xff]
      %v1040 = vld [vmem:[#allocation2 + $0x80] sm:$0xff]
      %v1041 = vld [vmem:[#allocation2 + $0x88] sm:$0xff]
      %v1042 = vld [vmem:[#allocation2 + $0x90] sm:$0xff]
      %v1043 = vld [vmem:[#allocation2 + $0x98] sm:$0xff]
      %v1044 = vld [vmem:[#allocation2 + $0xa0] sm:$0xff]
      %v1045 = vld [vmem:[#allocation2 + $0xa8] sm:$0xff]
      %v1046 = vld [vmem:[#allocation2 + $0xb0] sm:$0xff]
      %v1047 = vld [vmem:[#allocation2 + $0xb8] sm:$0xff]
      %v1048 = vld [vmem:[#allocation2 + $0xc0] sm:$0xff]
      %v1049 = vld [vmem:[#allocation2 + $0xc8] sm:$0xff]
      %v1050 = vld [vmem:[#allocation2 + $0xd0] sm:$0xff]
      %v1051 = vld [vmem:[#allocation2 + $0xd8] sm:$0xff]
      %v1052 = vld [vmem:[#allocation2 + $0xe0] sm:$0xff]
      %v1053 = vld [vmem:[#allocation2 + $0xe8] sm:$0xff]
      %v1054 = vld [vmem:[#allocation2 + $0xf0] sm:$0xff]
      %v1055 = vld [vmem:[#allocation2 + $0xf8] sm:$0xff]
      %v1056 = vld [vmem:[#allocation2 + $0x100] sm:$0xff]
      %v1057 = vld [vmem:[#allocation2 + $0x108] sm:$0xff]
      %v1058 = vld [vmem:[#allocation2 + $0x110] sm:$0xff]
      %v1059 = vld [vmem:[#allocation2 + $0x118] sm:$0xff]
      %v1060 = vld [vmem:[#allocation2 + $0x120] sm:$0xff]
      %v1061 = vld [vmem:[#allocation2 + $0x128] sm:$0xff]
      %v1062 = vld [vmem:[#allocation2 + $0x130] sm:$0xff]
      %v1063 = vld [vmem:[#allocation2 + $0x138] sm:$0xff]
      %v1064 = vld [vmem:[#allocation2 + $0x140] sm:$0xff]
      %v1065 = vld [vmem:[#allocation2 + $0x148] sm:$0xff]
      %v1066 = vld [vmem:[#allocation2 + $0x150] sm:$0xff]
      %v1067 = vld [vmem:[#allocation2 + $0x158] sm:$0xff]
      %v1068 = vld [vmem:[#allocation2 + $0x160] sm:$0xff]
      %v1069 = vld [vmem:[#allocation2 + $0x168] sm:$0xff]
      %v1070 = vld [vmem:[#allocation2 + $0x170] sm:$0xff]
      %v1071 = vld [vmem:[#allocation2 + $0x178] sm:$0xff]
      %v1072 = vld [vmem:[#allocation2 + $0x180] sm:$0xff]
      %v1073 = vld [vmem:[#allocation2 + $0x188] sm:$0xff]
      %v1074 = vld [vmem:[#allocation2 + $0x190] sm:$0xff]
      %v1075 = vld [vmem:[#allocation2 + $0x198] sm:$0xff]
      %v1076 = vld [vmem:[#allocation2 + $0x1a0] sm:$0xff]
      %v1077 = vld [vmem:[#allocation2 + $0x1a8] sm:$0xff]
      %v1078 = vld [vmem:[#allocation2 + $0x1b0] sm:$0xff]
      %v1079 = vld [vmem:[#allocation2 + $0x1b8] sm:$0xff]
      %v1080 = vld [vmem:[#allocation2 + $0x1c0] sm:$0xff]
      %v1081 = vld [vmem:[#allocation2 + $0x1c8] sm:$0xff]
      %v1082 = vld [vmem:[#allocation2 + $0x1d0] sm:$0xff]
      %v1083 = vld [vmem:[#allocation2 + $0x1d8] sm:$0xff]
      %v1084 = vld [vmem:[#allocation2 + $0x1e0] sm:$0xff]
      %v1085 = vld [vmem:[#allocation2 + $0x1e8] sm:$0xff]
      %v1086 = vld [vmem:[#allocation2 + $0x1f0] sm:$0xff]
      %v1087 = vld [vmem:[#allocation2 + $0x1f8] sm:$0xff]
      %v1088 = vld [vmem:[#allocation2 + $0x200] sm:$0xff]
      %v1089 = vld [vmem:[#allocation2 + $0x208] sm:$0xff]
      %v1090 = vld [vmem:[#allocation2 + $0x210] sm:$0xff]
      %v1091 = vld [vmem:[#allocation2 + $0x218] sm:$0xff]
      %v1092 = vld [vmem:[#allocation2 + $0x220] sm:$0xff]
      %v1093 = vld [vmem:[#allocation2 + $0x228] sm:$0xff]
      %v1094 = vld [vmem:[#allocation2 + $0x230] sm:$0xff]
      %v1095 = vld [vmem:[#allocation2 + $0x238] sm:$0xff]
      %v1096 = vld [vmem:[#allocation2 + $0x240] sm:$0xff]
      %v1097 = vld [vmem:[#allocation2 + $0x248] sm:$0xff]
      %v1098 = vld [vmem:[#allocation2 + $0x250] sm:$0xff]
      %v1099 = vld [vmem:[#allocation2 + $0x258] sm:$0xff]
      %v1100 = vld [vmem:[#allocation2 + $0x260] sm:$0xff]
      %v1101 = vld [vmem:[#allocation2 + $0x268] sm:$0xff]
      %v1102 = vld [vmem:[#allocation2 + $0x270] sm:$0xff]
      %v1103 = vld [vmem:[#allocation2 + $0x278] sm:$0xff]
      %v1104 = vld [vmem:[#allocation2 + $0x280] sm:$0xff]
      %v1105 = vld [vmem:[#allocation2 + $0x288] sm:$0xff]
      %v1106 = vld [vmem:[#allocation2 + $0x290] sm:$0xff]
      %v1107 = vld [vmem:[#allocation2 + $0x298] sm:$0xff]
      %v1108 = vld [vmem:[#allocation2 + $0x2a0] sm:$0xff]
      %v1109 = vld [vmem:[#allocation2 + $0x2a8] sm:$0xff]
      %v1110 = vld [vmem:[#allocation2 + $0x2b0] sm:$0xff]
      %v1111 = vld [vmem:[#allocation2 + $0x2b8] sm:$0xff]
      %v1112 = vld [vmem:[#allocation2 + $0x2c0] sm:$0xff]
      %v1113 = vld [vmem:[#allocation2 + $0x2c8] sm:$0xff]
      %v1114 = vld [vmem:[#allocation2 + $0x2d0] sm:$0xff]
      %v1115 = vld [vmem:[#allocation2 + $0x2d8] sm:$0xff]
      %v1116 = vld [vmem:[#allocation2 + $0x2e0] sm:$0xff]
      %v1117 = vld [vmem:[#allocation2 + $0x2e8] sm:$0xff]
      %v1118 = vld [vmem:[#allocation2 + $0x2f0] sm:$0xff]
      %v1119 = vld [vmem:[#allocation2 + $0x2f8] sm:$0xff]
      %v1120 = vld [vmem:[#allocation2 + $0x300] sm:$0xff]
      %v1121 = vld [vmem:[#allocation2 + $0x308] sm:$0xff]
      %v1122 = vld [vmem:[#allocation2 + $0x310] sm:$0xff]
      %v1123 = vld [vmem:[#allocation2 + $0x318] sm:$0xff]
      %v1124 = vld [vmem:[#allocation2 + $0x320] sm:$0xff]
      %v1125 = vld [vmem:[#allocation2 + $0x328] sm:$0xff]
      %v1126 = vld [vmem:[#allocation2 + $0x330] sm:$0xff]
      %v1127 = vld [vmem:[#allocation2 + $0x338] sm:$0xff]
      %v1128 = vld [vmem:[#allocation2 + $0x340] sm:$0xff]
      %v1129 = vld [vmem:[#allocation2 + $0x348] sm:$0xff]
      %v1130 = vld [vmem:[#allocation2 + $0x350] sm:$0xff]
      %v1131 = vld [vmem:[#allocation2 + $0x358] sm:$0xff]
      %v1132 = vld [vmem:[#allocation2 + $0x360] sm:$0xff]
      %v1133 = vld [vmem:[#allocation2 + $0x368] sm:$0xff]
      %v1134 = vld [vmem:[#allocation2 + $0x370] sm:$0xff]
      %v1135 = vld [vmem:[#allocation2 + $0x378] sm:$0xff]
      %v1136 = vld [vmem:[#allocation2 + $0x380] sm:$0xff]
      %v1137 = vld [vmem:[#allocation2 + $0x388] sm:$0xff]
      %v1138 = vld [vmem:[#allocation8] sm:$0x7]
      %v1140 = vperm.slane %v1138, 0
      %v1141 = vperm.slane %v1138, 1
      %v1142 = vperm.slane %v1138, 2
      %v1146 = vadd.f32 %v1024, %v1140
      %v1147 = vadd.f32 %v1025, %v1141
      %v1148 = vadd.f32 %v1026, %v1142
      %v1149 = vadd.f32 %v1027, %v1140
      %v1150 = vadd.f32 %v1028, %v1141
      %v1151 = vadd.f32 %v1029, %v1142
      %v1152 = vadd.f32 %v1030, %v1140
      %v1153 = vadd.f32 %v1031, %v1141
      %v1154 = vadd.f32 %v1032, %v1142
      %v1155 = vadd.f32 %v1033, %v1140
      %v1156 = vadd.f32 %v1034, %v1141
      %v1157 = vadd.f32 %v1035, %v1142
      %v1158 = vadd.f32 %v1036, %v1140
      %v1159 = vadd.f32 %v1037, %v1141
      %v1160 = vadd.f32 %v1038, %v1142
      %v1161 = vadd.f32 %v1039, %v1140
      %v1162 = vadd.f32 %v1040, %v1141
      %v1163 = vadd.f32 %v1041, %v1142
      %v1164 = vadd.f32 %v1042, %v1140
      %v1165 = vadd.f32 %v1043, %v1141
      %v1166 = vadd.f32 %v1044, %v1142
      %v1167 = vadd.f32 %v1045, %v1140
      %v1168 = vadd.f32 %v1046, %v1141
      %v1169 = vadd.f32 %v1047, %v1142
      %v1170 = vadd.f32 %v1048, %v1140
      %v1171 = vadd.f32 %v1049, %v1141
      %v1172 = vadd.f32 %v1050, %v1142
      %v1173 = vadd.f32 %v1051, %v1140
      %v1174 = vadd.f32 %v1052, %v1141
      %v1175 = vadd.f32 %v1053, %v1142
      %v1176 = vadd.f32 %v1054, %v1140
      %v1177 = vadd.f32 %v1055, %v1141
      %v1178 = vadd.f32 %v1056, %v1142
      %v1179 = vadd.f32 %v1057, %v1140
      %v1180 = vadd.f32 %v1058, %v1141
      %v1181 = vadd.f32 %v1059, %v1142
      %v1182 = vadd.f32 %v1060, %v1140
      %v1183 = vadd.f32 %v1061, %v1141
      %v1184 = vadd.f32 %v1062, %v1142
      %v1185 = vadd.f32 %v1063, %v1140
      %v1186 = vadd.f32 %v1064, %v1141
      %v1187 = vadd.f32 %v1065, %v1142
      %v1188 = vadd.f32 %v1066, %v1140
      %v1189 = vadd.f32 %v1067, %v1141
      %v1190 = vadd.f32 %v1068, %v1142
      %v1191 = vadd.f32 %v1069, %v1140
      %v1192 = vadd.f32 %v1070, %v1141
      %v1193 = vadd.f32 %v1071, %v1142
      %v1194 = vadd.f32 %v1072, %v1140
      %v1195 = vadd.f32 %v1073, %v1141
      %v1196 = vadd.f32 %v1074, %v1142
      %v1197 = vadd.f32 %v1075, %v1140
      %v1198 = vadd.f32 %v1076, %v1141
      %v1199 = vadd.f32 %v1077, %v1142
      %v1200 = vadd.f32 %v1078, %v1140
      %v1201 = vadd.f32 %v1079, %v1141
      %v1202 = vadd.f32 %v1080, %v1142
      %v1203 = vadd.f32 %v1081, %v1140
      %v1204 = vadd.f32 %v1082, %v1141
      %v1205 = vadd.f32 %v1083, %v1142
      %v1206 = vadd.f32 %v1084, %v1140
      %v1207 = vadd.f32 %v1085, %v1141
      %v1208 = vadd.f32 %v1086, %v1142
      %v1209 = vadd.f32 %v1087, %v1140
      %v1210 = vadd.f32 %v1088, %v1141
      %v1211 = vadd.f32 %v1089, %v1142
      %v1212 = vadd.f32 %v1090, %v1140
      %v1213 = vadd.f32 %v1091, %v1141
      %v1214 = vadd.f32 %v1092, %v1142
      %v1215 = vadd.f32 %v1093, %v1140
      %v1216 = vadd.f32 %v1094, %v1141
      %v1217 = vadd.f32 %v1095, %v1142
      %v1218 = vadd.f32 %v1096, %v1140
      %v1219 = vadd.f32 %v1097, %v1141
      %v1220 = vadd.f32 %v1098, %v1142
      %v1221 = vadd.f32 %v1099, %v1140
      %v1222 = vadd.f32 %v1100, %v1141
      %v1223 = vadd.f32 %v1101, %v1142
      %v1224 = vadd.f32 %v1102, %v1140
      %v1225 = vadd.f32 %v1103, %v1141
      %v1226 = vadd.f32 %v1104, %v1142
      %v1227 = vadd.f32 %v1105, %v1140
      %v1228 = vadd.f32 %v1106, %v1141
      %v1229 = vadd.f32 %v1107, %v1142
      %v1230 = vadd.f32 %v1108, %v1140
      %v1231 = vadd.f32 %v1109, %v1141
      %v1232 = vadd.f32 %v1110, %v1142
      %v1233 = vadd.f32 %v1111, %v1140
      %v1234 = vadd.f32 %v1112, %v1141
      %v1235 = vadd.f32 %v1113, %v1142
      %v1236 = vadd.f32 %v1114, %v1140
      %v1237 = vadd.f32 %v1115, %v1141
      %v1238 = vadd.f32 %v1116, %v1142
      %v1239 = vadd.f32 %v1117, %v1140
      %v1240 = vadd.f32 %v1118, %v1141
      %v1241 = vadd.f32 %v1119, %v1142
      %v1242 = vadd.f32 %v1120, %v1140
      %v1243 = vadd.f32 %v1121, %v1141
      %v1244 = vadd.f32 %v1122, %v1142
      %v1245 = vadd.f32 %v1123, %v1140
      %v1246 = vadd.f32 %v1124, %v1141
      %v1247 = vadd.f32 %v1125, %v1142
      %v1248 = vadd.f32 %v1126, %v1140
      %v1249 = vadd.f32 %v1127, %v1141
      %v1250 = vadd.f32 %v1128, %v1142
      %v1251 = vadd.f32 %v1129, %v1140
      %v1252 = vadd.f32 %v1130, %v1141
      %v1253 = vadd.f32 %v1131, %v1142
      %v1254 = vadd.f32 %v1132, %v1140
      %v1255 = vadd.f32 %v1133, %v1141
      %v1256 = vadd.f32 %v1134, %v1142
      %v1257 = vadd.f32 %v1135, %v1140
      %v1258 = vadd.f32 %v1136, %v1141
      %v1259 = vadd.f32 %v1137, %v1142
      %v1260 = vmul.f32 %v1146, 0.5
      %v1261 = vmul.f32 %v1149, 0.5
      %v1262 = vmul.f32 %v1152, 0.5
      %v1263 = vmul.f32 %v1155, 0.5
      %v1264 = vmul.f32 %v1158, 0.5
      %v1265 = vmul.f32 %v1161, 0.5
      %v1266 = vmul.f32 %v1164, 0.5
      %v1267 = vmul.f32 %v1167, 0.5
      %v1268 = vmul.f32 %v1170, 0.5
      %v1269 = vmul.f32 %v1173, 0.5
      %v1270 = vmul.f32 %v1176, 0.5
      %v1271 = vmul.f32 %v1179, 0.5
      %v1272 = vmul.f32 %v1182, 0.5
      %v1273 = vmul.f32 %v1185, 0.5
      %v1274 = vmul.f32 %v1188, 0.5
      %v1275 = vmul.f32 %v1191, 0.5
      %v1276 = vmul.f32 %v1194, 0.5
      %v1277 = vmul.f32 %v1197, 0.5
      %v1278 = vmul.f32 %v1200, 0.5
      %v1279 = vmul.f32 %v1203, 0.5
      %v1280 = vmul.f32 %v1206, 0.5
      %v1281 = vmul.f32 %v1209, 0.5
      %v1282 = vmul.f32 %v1212, 0.5
      %v1283 = vmul.f32 %v1215, 0.5
      %v1284 = vmul.f32 %v1218, 0.5
      %v1285 = vmul.f32 %v1221, 0.5
      %v1286 = vmul.f32 %v1224, 0.5
      %v1287 = vmul.f32 %v1227, 0.5
      %v1288 = vmul.f32 %v1230, 0.5
      %v1289 = vmul.f32 %v1233, 0.5
      %v1290 = vmul.f32 %v1236, 0.5
      %v1291 = vmul.f32 %v1239, 0.5
      %v1292 = vmul.f32 %v1242, 0.5
      %v1293 = vmul.f32 %v1245, 0.5
      %v1294 = vmul.f32 %v1248, 0.5
      %v1295 = vmul.f32 %v1251, 0.5
      %v1296 = vmul.f32 %v1254, 0.5
      %v1297 = vmul.f32 %v1257, 0.5
      %v1298 = vtanh.pop %v1260
      %v1299 = vtanh.pop %v1261
      %v1300 = vtanh.pop %v1262
      %v1301 = vtanh.pop %v1263
      %v1302 = vtanh.pop %v1264
      %v1303 = vtanh.pop %v1265
      %v1304 = vtanh.pop %v1266
      %v1305 = vtanh.pop %v1267
      %v1306 = vtanh.pop %v1268
      %v1307 = vtanh.pop %v1269
      %v1308 = vtanh.pop %v1270
      %v1309 = vtanh.pop %v1271
      %v1310 = vtanh.pop %v1272
      %v1311 = vtanh.pop %v1273
      %v1312 = vtanh.pop %v1274
      %v1313 = vtanh.pop %v1275
      %v1314 = vtanh.pop %v1276
      %v1315 = vtanh.pop %v1277
      %v1316 = vtanh.pop %v1278
      %v1317 = vtanh.pop %v1279
      %v1318 = vtanh.pop %v1280
      %v1319 = vtanh.pop %v1281
      %v1320 = vtanh.pop %v1282
      %v1321 = vtanh.pop %v1283
      %v1322 = vtanh.pop %v1284
      %v1323 = vtanh.pop %v1285
      %v1324 = vtanh.pop %v1286
      %v1325 = vtanh.pop %v1287
      %v1326 = vtanh.pop %v1288
      %v1327 = vtanh.pop %v1289
      %v1328 = vtanh.pop %v1290
      %v1329 = vtanh.pop %v1291
      %v1330 = vtanh.pop %v1292
      %v1331 = vtanh.pop %v1293
      %v1332 = vtanh.pop %v1294
      %v1333 = vtanh.pop %v1295
      %v1334 = vtanh.pop %v1296
      %v1335 = vtanh.pop %v1297
      %v1336 = vadd.f32 %v1298, 1.0
      %v1337 = vadd.f32 %v1299, 1.0
      %v1338 = vadd.f32 %v1300, 1.0
      %v1339 = vadd.f32 %v1301, 1.0
      %v1340 = vadd.f32 %v1302, 1.0
      %v1341 = vadd.f32 %v1303, 1.0
      %v1342 = vadd.f32 %v1304, 1.0
      %v1343 = vadd.f32 %v1305, 1.0
      %v1344 = vadd.f32 %v1306, 1.0
      %v1345 = vadd.f32 %v1307, 1.0
      %v1346 = vadd.f32 %v1308, 1.0
      %v1347 = vadd.f32 %v1309, 1.0
      %v1348 = vadd.f32 %v1310, 1.0
      %v1349 = vadd.f32 %v1311, 1.0
      %v1350 = vadd.f32 %v1312, 1.0
      %v1351 = vadd.f32 %v1313, 1.0
      %v1352 = vadd.f32 %v1314, 1.0
      %v1353 = vadd.f32 %v1315, 1.0
      %v1354 = vadd.f32 %v1316, 1.0
      %v1355 = vadd.f32 %v1317, 1.0
      %v1356 = vadd.f32 %v1318, 1.0
      %v1357 = vadd.f32 %v1319, 1.0
      %v1358 = vadd.f32 %v1320, 1.0
      %v1359 = vadd.f32 %v1321, 1.0
      %v1360 = vadd.f32 %v1322, 1.0
      %v1361 = vadd.f32 %v1323, 1.0
      %v1362 = vadd.f32 %v1324, 1.0
      %v1363 = vadd.f32 %v1325, 1.0
      %v1364 = vadd.f32 %v1326, 1.0
      %v1365 = vadd.f32 %v1327, 1.0
      %v1366 = vadd.f32 %v1328, 1.0
      %v1367 = vadd.f32 %v1329, 1.0
      %v1368 = vadd.f32 %v1330, 1.0
      %v1369 = vadd.f32 %v1331, 1.0
      %v1370 = vadd.f32 %v1332, 1.0
      %v1371 = vadd.f32 %v1333, 1.0
      %v1372 = vadd.f32 %v1334, 1.0
      %v1373 = vadd.f32 %v1335, 1.0
      %v1374 = vmul.f32 %v1336, 0.5
      %v1375 = vmul.f32 %v1337, 0.5
      %v1376 = vmul.f32 %v1338, 0.5
      %v1377 = vmul.f32 %v1339, 0.5
      %v1378 = vmul.f32 %v1340, 0.5
      %v1379 = vmul.f32 %v1341, 0.5
      %v1380 = vmul.f32 %v1342, 0.5
      %v1381 = vmul.f32 %v1343, 0.5
      %v1382 = vmul.f32 %v1344, 0.5
      %v1383 = vmul.f32 %v1345, 0.5
      %v1384 = vmul.f32 %v1346, 0.5
      %v1385 = vmul.f32 %v1347, 0.5
      %v1386 = vmul.f32 %v1348, 0.5
      %v1387 = vmul.f32 %v1349, 0.5
      %v1388 = vmul.f32 %v1350, 0.5
      %v1389 = vmul.f32 %v1351, 0.5
      %v1390 = vmul.f32 %v1352, 0.5
      %v1391 = vmul.f32 %v1353, 0.5
      %v1392 = vmul.f32 %v1354, 0.5
      %v1393 = vmul.f32 %v1355, 0.5
      %v1394 = vmul.f32 %v1356, 0.5
      %v1395 = vmul.f32 %v1357, 0.5
      %v1396 = vmul.f32 %v1358, 0.5
      %v1397 = vmul.f32 %v1359, 0.5
      %v1398 = vmul.f32 %v1360, 0.5
      %v1399 = vmul.f32 %v1361, 0.5
      %v1400 = vmul.f32 %v1362, 0.5
      %v1401 = vmul.f32 %v1363, 0.5
      %v1402 = vmul.f32 %v1364, 0.5
      %v1403 = vmul.f32 %v1365, 0.5
      %v1404 = vmul.f32 %v1366, 0.5
      %v1405 = vmul.f32 %v1367, 0.5
      %v1406 = vmul.f32 %v1368, 0.5
      %v1407 = vmul.f32 %v1369, 0.5
      %v1408 = vmul.f32 %v1370, 0.5
      %v1409 = vmul.f32 %v1371, 0.5
      %v1410 = vmul.f32 %v1372, 0.5
      %v1411 = vmul.f32 %v1373, 0.5
      %v1412 = vtanh.pop %v1147
      %v1413 = vtanh.pop %v1150
      %v1414 = vtanh.pop %v1153
      %v1415 = vtanh.pop %v1156
      %v1416 = vtanh.pop %v1159
      %v1417 = vtanh.pop %v1162
      %v1418 = vtanh.pop %v1165
      %v1419 = vtanh.pop %v1168
      %v1420 = vtanh.pop %v1171
      %v1421 = vtanh.pop %v1174
      %v1422 = vtanh.pop %v1177
      %v1423 = vtanh.pop %v1180
      %v1424 = vtanh.pop %v1183
      %v1425 = vtanh.pop %v1186
      %v1426 = vtanh.pop %v1189
      %v1427 = vtanh.pop %v1192
      %v1428 = vtanh.pop %v1195
      %v1429 = vtanh.pop %v1198
      %v1430 = vtanh.pop %v1201
      %v1431 = vtanh.pop %v1204
      %v1432 = vtanh.pop %v1207
      %v1433 = vtanh.pop %v1210
      %v1434 = vtanh.pop %v1213
      %v1435 = vtanh.pop %v1216
      %v1436 = vtanh.pop %v1219
      %v1437 = vtanh.pop %v1222
      %v1438 = vtanh.pop %v1225
      %v1439 = vtanh.pop %v1228
      %v1440 = vtanh.pop %v1231
      %v1441 = vtanh.pop %v1234
      %v1442 = vtanh.pop %v1237
      %v1443 = vtanh.pop %v1240
      %v1444 = vtanh.pop %v1243
      %v1445 = vtanh.pop %v1246
      %v1446 = vtanh.pop %v1249
      %v1447 = vtanh.pop %v1252
      %v1448 = vtanh.pop %v1255
      %v1449 = vtanh.pop %v1258
      %v1450 = vmul.f32 %v1148, 0.5
      %v1451 = vmul.f32 %v1151, 0.5
      %v1452 = vmul.f32 %v1154, 0.5
      %v1453 = vmul.f32 %v1157, 0.5
      %v1454 = vmul.f32 %v1160, 0.5
      %v1455 = vmul.f32 %v1163, 0.5
      %v1456 = vmul.f32 %v1166, 0.5
      %v1457 = vmul.f32 %v1169, 0.5
      %v1458 = vmul.f32 %v1172, 0.5
      %v1459 = vmul.f32 %v1175, 0.5
      %v1460 = vmul.f32 %v1178, 0.5
      %v1461 = vmul.f32 %v1181, 0.5
      %v1462 = vmul.f32 %v1184, 0.5
      %v1463 = vmul.f32 %v1187, 0.5
      %v1464 = vmul.f32 %v1190, 0.5
      %v1465 = vmul.f32 %v1193, 0.5
      %v1466 = vmul.f32 %v1196, 0.5
      %v1467 = vmul.f32 %v1199, 0.5
      %v1468 = vmul.f32 %v1202, 0.5
      %v1469 = vmul.f32 %v1205, 0.5
      %v1470 = vmul.f32 %v1208, 0.5
      %v1471 = vmul.f32 %v1211, 0.5
      %v1472 = vmul.f32 %v1214, 0.5
      %v1473 = vmul.f32 %v1217, 0.5
      %v1474 = vmul.f32 %v1220, 0.5
      %v1475 = vmul.f32 %v1223, 0.5
      %v1476 = vmul.f32 %v1226, 0.5
      %v1477 = vmul.f32 %v1229, 0.5
      %v1478 = vmul.f32 %v1232, 0.5
      %v1479 = vmul.f32 %v1235, 0.5
      %v1480 = vmul.f32 %v1238, 0.5
      %v1481 = vmul.f32 %v1241, 0.5
      %v1482 = vmul.f32 %v1244, 0.5
      %v1483 = vmul.f32 %v1247, 0.5
      %v1484 = vmul.f32 %v1250, 0.5
      %v1485 = vmul.f32 %v1253, 0.5
      %v1486 = vmul.f32 %v1256, 0.5
      %v1487 = vmul.f32 %v1259, 0.5
      %v1488 = vtanh.pop %v1450
      %v1489 = vtanh.pop %v1451
      %v1490 = vtanh.pop %v1452
      %v1491 = vtanh.pop %v1453
      %v1492 = vtanh.pop %v1454
      %v1493 = vtanh.pop %v1455
      %v1494 = vtanh.pop %v1456
      %v1495 = vtanh.pop %v1457
      %v1496 = vtanh.pop %v1458
      %v1497 = vtanh.pop %v1459
      %v1498 = vtanh.pop %v1460
      %v1499 = vtanh.pop %v1461
      %v1500 = vtanh.pop %v1462
      %v1501 = vtanh.pop %v1463
      %v1502 = vtanh.pop %v1464
      %v1503 = vtanh.pop %v1465
      %v1504 = vtanh.pop %v1466
      %v1505 = vtanh.pop %v1467
      %v1506 = vtanh.pop %v1468
      %v1507 = vtanh.pop %v1469
      %v1508 = vtanh.pop %v1470
      %v1509 = vtanh.pop %v1471
      %v1510 = vtanh.pop %v1472
      %v1511 = vtanh.pop %v1473
      %v1512 = vtanh.pop %v1474
      %v1513 = vtanh.pop %v1475
      %v1514 = vtanh.pop %v1476
      %v1515 = vtanh.pop %v1477
      %v1516 = vtanh.pop %v1478
      %v1517 = vtanh.pop %v1479
      %v1518 = vtanh.pop %v1480
      %v1519 = vtanh.pop %v1481
      %v1520 = vtanh.pop %v1482
      %v1521 = vtanh.pop %v1483
      %v1522 = vtanh.pop %v1484
      %v1523 = vtanh.pop %v1485
      %v1524 = vtanh.pop %v1486
      %v1525 = vtanh.pop %v1487
      %v1526 = vadd.f32 %v1488, 1.0
      %v1527 = vadd.f32 %v1489, 1.0
      %v1528 = vadd.f32 %v1490, 1.0
      %v1529 = vadd.f32 %v1491, 1.0
      %v1530 = vadd.f32 %v1492, 1.0
      %v1531 = vadd.f32 %v1493, 1.0
      %v1532 = vadd.f32 %v1494, 1.0
      %v1533 = vadd.f32 %v1495, 1.0
      %v1534 = vadd.f32 %v1496, 1.0
      %v1535 = vadd.f32 %v1497, 1.0
      %v1536 = vadd.f32 %v1498, 1.0
      %v1537 = vadd.f32 %v1499, 1.0
      %v1538 = vadd.f32 %v1500, 1.0
      %v1539 = vadd.f32 %v1501, 1.0
      %v1540 = vadd.f32 %v1502, 1.0
      %v1541 = vadd.f32 %v1503, 1.0
      %v1542 = vadd.f32 %v1504, 1.0
      %v1543 = vadd.f32 %v1505, 1.0
      %v1544 = vadd.f32 %v1506, 1.0
      %v1545 = vadd.f32 %v1507, 1.0
      %v1546 = vadd.f32 %v1508, 1.0
      %v1547 = vadd.f32 %v1509, 1.0
      %v1548 = vadd.f32 %v1510, 1.0
      %v1549 = vadd.f32 %v1511, 1.0
      %v1550 = vadd.f32 %v1512, 1.0
      %v1551 = vadd.f32 %v1513, 1.0
      %v1552 = vadd.f32 %v1514, 1.0
      %v1553 = vadd.f32 %v1515, 1.0
      %v1554 = vadd.f32 %v1516, 1.0
      %v1555 = vadd.f32 %v1517, 1.0
      %v1556 = vadd.f32 %v1518, 1.0
      %v1557 = vadd.f32 %v1519, 1.0
      %v1558 = vadd.f32 %v1520, 1.0
      %v1559 = vadd.f32 %v1521, 1.0
      %v1560 = vadd.f32 %v1522, 1.0
      %v1561 = vadd.f32 %v1523, 1.0
      %v1562 = vadd.f32 %v1524, 1.0
      %v1563 = vadd.f32 %v1525, 1.0
      %v1564 = vmul.f32 %v1526, 0.5
      %v1565 = vmul.f32 %v1527, 0.5
      %v1566 = vmul.f32 %v1528, 0.5
      %v1567 = vmul.f32 %v1529, 0.5
      %v1568 = vmul.f32 %v1530, 0.5
      %v1569 = vmul.f32 %v1531, 0.5
      %v1570 = vmul.f32 %v1532, 0.5
      %v1571 = vmul.f32 %v1533, 0.5
      %v1572 = vmul.f32 %v1534, 0.5
      %v1573 = vmul.f32 %v1535, 0.5
      %v1574 = vmul.f32 %v1536, 0.5
      %v1575 = vmul.f32 %v1537, 0.5
      %v1576 = vmul.f32 %v1538, 0.5
      %v1577 = vmul.f32 %v1539, 0.5
      %v1578 = vmul.f32 %v1540, 0.5
      %v1579 = vmul.f32 %v1541, 0.5
      %v1580 = vmul.f32 %v1542, 0.5
      %v1581 = vmul.f32 %v1543, 0.5
      %v1582 = vmul.f32 %v1544, 0.5
      %v1583 = vmul.f32 %v1545, 0.5
      %v1584 = vmul.f32 %v1546, 0.5
      %v1585 = vmul.f32 %v1547, 0.5
      %v1586 = vmul.f32 %v1548, 0.5
      %v1587 = vmul.f32 %v1549, 0.5
      %v1588 = vmul.f32 %v1550, 0.5
      %v1589 = vmul.f32 %v1551, 0.5
      %v1590 = vmul.f32 %v1552, 0.5
      %v1591 = vmul.f32 %v1553, 0.5
      %v1592 = vmul.f32 %v1554, 0.5
      %v1593 = vmul.f32 %v1555, 0.5
      %v1594 = vmul.f32 %v1556, 0.5
      %v1595 = vmul.f32 %v1557, 0.5
      %v1596 = vmul.f32 %v1558, 0.5
      %v1597 = vmul.f32 %v1559, 0.5
      %v1598 = vmul.f32 %v1560, 0.5
      %v1599 = vmul.f32 %v1561, 0.5
      %v1600 = vmul.f32 %v1562, 0.5
      %v1601 = vmul.f32 %v1563, 0.5
      %v1602 = vmul.f32 %v1374, %v1412
      %v1603 = vmul.f32 %v1375, %v1413
      %v1604 = vmul.f32 %v1376, %v1414
      %v1605 = vmul.f32 %v1377, %v1415
      %v1606 = vmul.f32 %v1378, %v1416
      %v1607 = vmul.f32 %v1379, %v1417
      %v1608 = vmul.f32 %v1380, %v1418
      %v1609 = vmul.f32 %v1381, %v1419
      %v1610 = vmul.f32 %v1382, %v1420
      %v1611 = vmul.f32 %v1383, %v1421
      %v1612 = vmul.f32 %v1384, %v1422
      %v1613 = vmul.f32 %v1385, %v1423
      %v1614 = vmul.f32 %v1386, %v1424
      %v1615 = vmul.f32 %v1387, %v1425
      %v1616 = vmul.f32 %v1388, %v1426
      %v1617 = vmul.f32 %v1389, %v1427
      %v1618 = vmul.f32 %v1390, %v1428
      %v1619 = vmul.f32 %v1391, %v1429
      %v1620 = vmul.f32 %v1392, %v1430
      %v1621 = vmul.f32 %v1393, %v1431
      %v1622 = vmul.f32 %v1394, %v1432
      %v1623 = vmul.f32 %v1395, %v1433
      %v1624 = vmul.f32 %v1396, %v1434
      %v1625 = vmul.f32 %v1397, %v1435
      %v1626 = vmul.f32 %v1398, %v1436
      %v1627 = vmul.f32 %v1399, %v1437
      %v1628 = vmul.f32 %v1400, %v1438
      %v1629 = vmul.f32 %v1401, %v1439
      %v1630 = vmul.f32 %v1402, %v1440
      %v1631 = vmul.f32 %v1403, %v1441
      %v1632 = vmul.f32 %v1404, %v1442
      %v1633 = vmul.f32 %v1405, %v1443
      %v1634 = vmul.f32 %v1406, %v1444
      %v1635 = vmul.f32 %v1407, %v1445
      %v1636 = vmul.f32 %v1408, %v1446
      %v1637 = vmul.f32 %v1409, %v1447
      %v1638 = vmul.f32 %v1410, %v1448
      %v1639 = vmul.f32 %v1411, %v1449
      %v1640 = vtanh.pop %v1602
      %v1641 = vtanh.pop %v1603
      %v1642 = vtanh.pop %v1604
      %v1643 = vtanh.pop %v1605
      %v1644 = vtanh.pop %v1606
      %v1645 = vtanh.pop %v1607
      %v1646 = vtanh.pop %v1608
      %v1647 = vtanh.pop %v1609
      %v1648 = vtanh.pop %v1610
      %v1649 = vtanh.pop %v1611
      %v1650 = vtanh.pop %v1612
      %v1651 = vtanh.pop %v1613
      %v1652 = vtanh.pop %v1614
      %v1653 = vtanh.pop %v1615
      %v1654 = vtanh.pop %v1616
      %v1655 = vtanh.pop %v1617
      %v1656 = vtanh.pop %v1618
      %v1657 = vtanh.pop %v1619
      %v1658 = vtanh.pop %v1620
      %v1659 = vtanh.pop %v1621
      %v1660 = vtanh.pop %v1622
      %v1661 = vtanh.pop %v1623
      %v1662 = vtanh.pop %v1624
      %v1663 = vtanh.pop %v1625
      %v1664 = vtanh.pop %v1626
      %v1665 = vtanh.pop %v1627
      %v1666 = vtanh.pop %v1628
      %v1667 = vtanh.pop %v1629
      %v1668 = vtanh.pop %v1630
      %v1669 = vtanh.pop %v1631
      %v1670 = vtanh.pop %v1632
      %v1671 = vtanh.pop %v1633
      %v1672 = vtanh.pop %v1634
      %v1673 = vtanh.pop %v1635
      %v1674 = vtanh.pop %v1636
      %v1675 = vtanh.pop %v1637
      %v1676 = vtanh.pop %v1638
      %v1677 = vtanh.pop %v1639
      %v1678 = vmul.f32 %v1564, %v1640
      %v1679 = vmul.f32 %v1565, %v1641
      %v1680 = vmul.f32 %v1566, %v1642
      %v1681 = vmul.f32 %v1567, %v1643
      %v1682 = vmul.f32 %v1568, %v1644
      %v1683 = vmul.f32 %v1569, %v1645
      %v1684 = vmul.f32 %v1570, %v1646
      %v1685 = vmul.f32 %v1571, %v1647
      %v1686 = vmul.f32 %v1572, %v1648
      %v1687 = vmul.f32 %v1573, %v1649
      %v1688 = vmul.f32 %v1574, %v1650
      %v1689 = vmul.f32 %v1575, %v1651
      %v1690 = vmul.f32 %v1576, %v1652
      %v1691 = vmul.f32 %v1577, %v1653
      %v1692 = vmul.f32 %v1578, %v1654
      %v1693 = vmul.f32 %v1579, %v1655
      %v1694 = vmul.f32 %v1580, %v1656
      %v1695 = vmul.f32 %v1581, %v1657
      %v1696 = vmul.f32 %v1582, %v1658
      %v1697 = vmul.f32 %v1583, %v1659
      %v1698 = vmul.f32 %v1584, %v1660
      %v1699 = vmul.f32 %v1585, %v1661
      %v1700 = vmul.f32 %v1586, %v1662
      %v1701 = vmul.f32 %v1587, %v1663
      %v1702 = vmul.f32 %v1588, %v1664
      %v1703 = vmul.f32 %v1589, %v1665
      %v1704 = vmul.f32 %v1590, %v1666
      %v1705 = vmul.f32 %v1591, %v1667
      %v1706 = vmul.f32 %v1592, %v1668
      %v1707 = vmul.f32 %v1593, %v1669
      %v1708 = vmul.f32 %v1594, %v1670
      %v1709 = vmul.f32 %v1595, %v1671
      %v1710 = vmul.f32 %v1596, %v1672
      %v1711 = vmul.f32 %v1597, %v1673
      %v1712 = vmul.f32 %v1598, %v1674
      %v1713 = vmul.f32 %v1599, %v1675
      %v1714 = vmul.f32 %v1600, %v1676
      %v1715 = vmul.f32 %v1601, %v1677
      %v1716 = vld [vmem:[#allocation9] sm:$0xff]
      %v1717 = vld [vmem:[#allocation9 + $0x8] sm:$0xff]
      %v1718 = vld [vmem:[#allocation9 + $0x10] sm:$0xff]
      %v1719 = vld [vmem:[#allocation9 + $0x18] sm:$0xff]
      %v1720 = vld [vmem:[#allocation9 + $0x20] sm:$0xff]
      %v1721 = vld [vmem:[#allocation9 + $0x28] sm:$0xff]
      %v1722 = vld [vmem:[#allocation9 + $0x30] sm:$0xff]
      %v1723 = vld [vmem:[#allocation9 + $0x38] sm:$0xff]
      %v1724 = vld [vmem:[#allocation9 + $0x40] sm:$0xff]
      %v1725 = vld [vmem:[#allocation9 + $0x48] sm:$0xff]
      %v1726 = vld [vmem:[#allocation9 + $0x50] sm:$0xff]
      %v1727 = vld [vmem:[#allocation9 + $0x58] sm:$0xff]
      %v1728 = vld [vmem:[#allocation9 + $0x60] sm:$0xff]
      %v1729 = vld [vmem:[#allocation9 + $0x68] sm:$0xff]
      %v1730 = vld [vmem:[#allocation9 + $0x70] sm:$0xff]
      %v1731 = vld [vmem:[#allocation9 + $0x78] sm:$0xff]
      %v1732 = vld [vmem:[%s4] sm:$0x1]
      %v1734 = vperm.slane %v1732, 0
      %1736 = vmatpush.msra.mxu0 %v1731
      %1737 = vmatpush.msra.mxu0 %v1730
      %1738 = vmatpush.msra.mxu0 %v1729
      %1739 = vmatpush.msra.mxu0 %v1728
      %1740 = vmatpush.msra.mxu0 %v1727
      %1741 = vmatpush.msra.mxu0 %v1726
      %1742 = vmatpush.msra.mxu0 %v1725
      %1743 = vmatpush.msra.mxu0 %v1724
      %1744 = vmatpush.msra.mxu0 %v1723
      %1745 = vmatpush.msra.mxu0 %v1722
      %1746 = vmatpush.msra.mxu0 %v1721
      %1747 = vmatpush.msra.mxu0 %v1720
      %1748 = vmatpush.msra.mxu0 %v1719
      %1749 = vmatpush.msra.mxu0 %v1718
      %1750 = vmatpush.msra.mxu0 %v1717
      %1751 = vmatpush.msra.mxu0 %v1716
      %1752 = vmatmul.f32.gmra.mxu0 %v1678
      %v1753 = vpop.f32.mrf.mxu0
      %v1754 = vadd.f32 %v1734, %v1753
      %1755 = vmatmul.f32.gmra.mxu0 %v1679
      %v1756 = vpop.f32.mrf.mxu0
      %v1757 = vadd.f32 %v1734, %v1756
      %1758 = vmatmul.f32.gmra.mxu0 %v1680
      %v1759 = vpop.f32.mrf.mxu0
      %v1760 = vadd.f32 %v1734, %v1759
      %1761 = vmatmul.f32.gmra.mxu0 %v1681
      %v1762 = vpop.f32.mrf.mxu0
      %v1763 = vadd.f32 %v1734, %v1762
      %1764 = vmatmul.f32.gmra.mxu0 %v1682
      %v1765 = vpop.f32.mrf.mxu0
      %v1766 = vadd.f32 %v1734, %v1765
      %1767 = vmatmul.f32.gmra.mxu0 %v1683
      %v1768 = vpop.f32.mrf.mxu0
      %v1769 = vadd.f32 %v1734, %v1768
      %1770 = vmatmul.f32.gmra.mxu0 %v1684
      %v1771 = vpop.f32.mrf.mxu0
      %v1772 = vadd.f32 %v1734, %v1771
      %1773 = vmatmul.f32.gmra.mxu0 %v1685
      %v1774 = vpop.f32.mrf.mxu0
      %v1775 = vadd.f32 %v1734, %v1774
      %1776 = vmatmul.f32.gmra.mxu0 %v1686
      %v1777 = vpop.f32.mrf.mxu0
      %v1778 = vadd.f32 %v1734, %v1777
      %1779 = vmatmul.f32.gmra.mxu0 %v1687
      %v1780 = vpop.f32.mrf.mxu0
      %v1781 = vadd.f32 %v1734, %v1780
      %1782 = vmatmul.f32.gmra.mxu0 %v1688
      %v1783 = vpop.f32.mrf.mxu0
      %v1784 = vadd.f32 %v1734, %v1783
      %1785 = vmatmul.f32.gmra.mxu0 %v1689
      %v1786 = vpop.f32.mrf.mxu0
      %v1787 = vadd.f32 %v1734, %v1786
      %1788 = vmatmul.f32.gmra.mxu0 %v1690
      %v1789 = vpop.f32.mrf.mxu0
      %v1790 = vadd.f32 %v1734, %v1789
      %1791 = vmatmul.f32.gmra.mxu0 %v1691
      %v1792 = vpop.f32.mrf.mxu0
      %v1793 = vadd.f32 %v1734, %v1792
      %1794 = vmatmul.f32.gmra.mxu0 %v1692
      %v1795 = vpop.f32.mrf.mxu0
      %v1796 = vadd.f32 %v1734, %v1795
      %1797 = vmatmul.f32.gmra.mxu0 %v1693
      %v1798 = vpop.f32.mrf.mxu0
      %v1799 = vadd.f32 %v1734, %v1798
      %1800 = vmatmul.f32.gmra.mxu0 %v1694
      %v1801 = vpop.f32.mrf.mxu0
      %v1802 = vadd.f32 %v1734, %v1801
      %1803 = vmatmul.f32.gmra.mxu0 %v1695
      %v1804 = vpop.f32.mrf.mxu0
      %v1805 = vadd.f32 %v1734, %v1804
      %1806 = vmatmul.f32.gmra.mxu0 %v1696
      %v1807 = vpop.f32.mrf.mxu0
      %v1808 = vadd.f32 %v1734, %v1807
      %1809 = vmatmul.f32.gmra.mxu0 %v1697
      %v1810 = vpop.f32.mrf.mxu0
      %v1811 = vadd.f32 %v1734, %v1810
      %1812 = vmatmul.f32.gmra.mxu0 %v1698
      %v1813 = vpop.f32.mrf.mxu0
      %v1814 = vadd.f32 %v1734, %v1813
      %1815 = vmatmul.f32.gmra.mxu0 %v1699
      %v1816 = vpop.f32.mrf.mxu0
      %v1817 = vadd.f32 %v1734, %v1816
      %1818 = vmatmul.f32.gmra.mxu0 %v1700
      %v1819 = vpop.f32.mrf.mxu0
      %v1820 = vadd.f32 %v1734, %v1819
      %1821 = vmatmul.f32.gmra.mxu0 %v1701
      %v1822 = vpop.f32.mrf.mxu0
      %v1823 = vadd.f32 %v1734, %v1822
      %1824 = vmatmul.f32.gmra.mxu0 %v1702
      %v1825 = vpop.f32.mrf.mxu0
      %v1826 = vadd.f32 %v1734, %v1825
      %1827 = vmatmul.f32.gmra.mxu0 %v1703
      %v1828 = vpop.f32.mrf.mxu0
      %v1829 = vadd.f32 %v1734, %v1828
      %1830 = vmatmul.f32.gmra.mxu0 %v1704
      %v1831 = vpop.f32.mrf.mxu0
      %v1832 = vadd.f32 %v1734, %v1831
      %1833 = vmatmul.f32.gmra.mxu0 %v1705
      %v1834 = vpop.f32.mrf.mxu0
      %v1835 = vadd.f32 %v1734, %v1834
      %1836 = vmatmul.f32.gmra.mxu0 %v1706
      %v1837 = vpop.f32.mrf.mxu0
      %v1838 = vadd.f32 %v1734, %v1837
      %1839 = vmatmul.f32.gmra.mxu0 %v1707
      %v1840 = vpop.f32.mrf.mxu0
      %v1841 = vadd.f32 %v1734, %v1840
      %1842 = vmatmul.f32.gmra.mxu0 %v1708
      %v1843 = vpop.f32.mrf.mxu0
      %v1844 = vadd.f32 %v1734, %v1843
      %1845 = vmatmul.f32.gmra.mxu0 %v1709
      %v1846 = vpop.f32.mrf.mxu0
      %v1847 = vadd.f32 %v1734, %v1846
      %1848 = vmatmul.f32.gmra.mxu0 %v1710
      %v1849 = vpop.f32.mrf.mxu0
      %v1850 = vadd.f32 %v1734, %v1849
      %1851 = vmatmul.f32.gmra.mxu0 %v1711
      %v1852 = vpop.f32.mrf.mxu0
      %v1853 = vadd.f32 %v1734, %v1852
      %1854 = vmatmul.f32.gmra.mxu0 %v1712
      %v1855 = vpop.f32.mrf.mxu0
      %v1856 = vadd.f32 %v1734, %v1855
      %1857 = vmatmul.f32.gmra.mxu0 %v1713
      %v1858 = vpop.f32.mrf.mxu0
      %v1859 = vadd.f32 %v1734, %v1858
      %1860 = vmatmul.f32.gmra.mxu0 %v1714
      %v1861 = vpop.f32.mrf.mxu0
      %v1862 = vadd.f32 %v1734, %v1861
      %1863 = vmatmul.f32.gmra.mxu0 %v1715
      %v1864 = vpop.f32.mrf.mxu0
      %v1865 = vadd.f32 %v1734, %v1864
      %1866 = vdwg.mxu0
      %1867 = vst [vmem:[#allocation11] sm:$0xff] %v1754
      %1868 = vst [vmem:[#allocation11 + $0x8] sm:$0xff] %v1757
      %1869 = vst [vmem:[#allocation11 + $0x10] sm:$0xff] %v1760
      %1870 = vst [vmem:[#allocation11 + $0x18] sm:$0xff] %v1763
      %1871 = vst [vmem:[#allocation11 + $0x20] sm:$0xff] %v1766
      %1872 = vst [vmem:[#allocation11 + $0x28] sm:$0xff] %v1769
      %1873 = vst [vmem:[#allocation11 + $0x30] sm:$0xff] %v1772
      %1874 = vst [vmem:[#allocation11 + $0x38] sm:$0xff] %v1775
      %1875 = vst [vmem:[#allocation11 + $0x40] sm:$0xff] %v1778
      %1876 = vst [vmem:[#allocation11 + $0x48] sm:$0xff] %v1781
      %1877 = vst [vmem:[#allocation11 + $0x50] sm:$0xff] %v1784
      %1878 = vst [vmem:[#allocation11 + $0x58] sm:$0xff] %v1787
      %1879 = vst [vmem:[#allocation11 + $0x60] sm:$0xff] %v1790
      %1880 = vst [vmem:[#allocation11 + $0x68] sm:$0xff] %v1793
      %1881 = vst [vmem:[#allocation11 + $0x70] sm:$0xff] %v1796
      %1882 = vst [vmem:[#allocation11 + $0x78] sm:$0xff] %v1799
      %1883 = vst [vmem:[#allocation11 + $0x80] sm:$0xff] %v1802
      %1884 = vst [vmem:[#allocation11 + $0x88] sm:$0xff] %v1805
      %1885 = vst [vmem:[#allocation11 + $0x90] sm:$0xff] %v1808
      %1886 = vst [vmem:[#allocation11 + $0x98] sm:$0xff] %v1811
      %1887 = vst [vmem:[#allocation11 + $0xa0] sm:$0xff] %v1814
      %1888 = vst [vmem:[#allocation11 + $0xa8] sm:$0xff] %v1817
      %1889 = vst [vmem:[#allocation11 + $0xb0] sm:$0xff] %v1820
      %1890 = vst [vmem:[#allocation11 + $0xb8] sm:$0xff] %v1823
      %1891 = vst [vmem:[#allocation11 + $0xc0] sm:$0xff] %v1826
      %1892 = vst [vmem:[#allocation11 + $0xc8] sm:$0xff] %v1829
      %1893 = vst [vmem:[#allocation11 + $0xd0] sm:$0xff] %v1832
      %1894 = vst [vmem:[#allocation11 + $0xd8] sm:$0xff] %v1835
      %1895 = vst [vmem:[#allocation11 + $0xe0] sm:$0xff] %v1838
      %1896 = vst [vmem:[#allocation11 + $0xe8] sm:$0xff] %v1841
      %1897 = vst [vmem:[#allocation11 + $0xf0] sm:$0xff] %v1844
      %1898 = vst [vmem:[#allocation11 + $0xf8] sm:$0xff] %v1847
      %1899 = vst [vmem:[#allocation11 + $0x100] sm:$0xff] %v1850
      %1900 = vst [vmem:[#allocation11 + $0x108] sm:$0xff] %v1853
      %1901 = vst [vmem:[#allocation11 + $0x110] sm:$0xff] %v1856
      %1902 = vst [vmem:[#allocation11 + $0x118] sm:$0xff] %v1859
      %1903 = vst [vmem:[#allocation11 + $0x120] sm:$0xff] %v1862
      %1904 = vst [vmem:[#allocation11 + $0x128] sm:$0xff] %v1865
    $region45: #{tpu_custom_call.1} parent=1 // pred_fallthru
      _
    // Predicated region
    $region46: #{tpu_custom_call.1} parent=1 // pred_check
      _
    $region47: #{tpu_custom_call.1} parent=1 // pred_check_branch
      %1906 = sbr.rel (0) target = $region49
    $region48: #{tpu_custom_call.1} parent=1 // pred_region
      %1908 = vsyncadd [#allocation5], 0
      %s1909 = sshll.u32 [#allocation11], 4
      %s1910 = int_to_ptr.vmem [resolvable:$true] %s1909
      %s1911 = sshll.u32 %s5, 4
      %s1912 = int_to_ptr.hbm [resolvable:$true] %s1911
      %1917 = dma.vmem_to_hbm [thread:$0]  %s1910, 4864, %s1912, [#allocation5], 128, 128, 8
    $region49: #{tpu_custom_call.1} parent=1 // pred_fallthru
      _
    // Predicated region
    $region50: #{tpu_custom_call.1} parent=1 // pred_check
      _
    $region51: #{tpu_custom_call.1} parent=1 // pred_check_branch
      %1919 = sbr.rel (0) target = $region53
    $region52: #{tpu_custom_call.1} parent=1 // pred_region
      %1921 = dma.done [#allocation5], 4864
    $region53: #{tpu_custom_call.1} parent=1 // pred_fallthru
      _
    %1922 = vsyncpa [#allocation4], 1
    %1923 = vsyncpa [#allocation7], 1
    %1924 = vsyncpa [#allocation10], 1
    %1925 = vsyncpa [#allocation5], 1

</llo_original>
